<compile_context>
chip_gen: v7x
topology: tpu7x:2x2x1
jax: 0.10.0
libtpu: 0.0.40
codegen_flags: <defaults>
</compile_context>

<pallas_src>
import math
from functools import partial

import numpy as np
import jax
import jax.numpy as jnp
from jax.experimental import pallas as pl
from jax.experimental.pallas import tpu as pltpu


def _round_up(x, m):
    return ((x + m - 1) // m) * m


def _pick_tile(n_pad, target):
    # n_pad is a multiple of 256; return the largest multiple of 256 <= target
    # that divides n_pad (so the K grid axis tiles exactly).
    t = min(target, n_pad)
    while n_pad % t:
        t -= 256
    return t


# ---------------------------------------------------------------------------
# Kernel 1: fused lane-dense projection + tanh gate (row-tiled, parallel).
# ---------------------------------------------------------------------------
def _proj_kernel(x_ref, w_ref, y_ref, xg_ref):
    x = x_ref[...]                                                    # (TM, C_pad) f32
    y = jnp.dot(x, w_ref[...], preferred_element_type=jnp.float32)   # (TM, 128) lane-dense
    y_ref[...] = y
    t = y[:, 2:3]                                                     # TopK projection score
    xg_ref[...] = x * jnp.tanh(t)                                     # f32 VPU/EUP math


# ---------------------------------------------------------------------------
# Kernel 2: GCN aggregation  score = y0 + (1-alpha) * (A_norm @ xw2)
# grid = (row tiles, K tiles); K (reduction) axis is last, f32 VMEM accumulator.
# ---------------------------------------------------------------------------
def _agg_kernel(alpha, y_ref, xw2_ref, adj_ref, score_ref, acc_ref):
    k = pl.program_id(1)

    @pl.when(k == 0)
    def _init():
        acc_ref[...] = jnp.zeros_like(acc_ref)

    adj = adj_ref[...].astype(jnp.float32)                            # bf16 HBM -> f32 compute
    part = jnp.dot(adj, xw2_ref[...], preferred_element_type=jnp.float32)  # (TM, 1)
    acc_ref[...] = acc_ref[...] + part                                # broadcast: lane-dense store

    @pl.when(k == pl.num_programs(1) - 1)
    def _finalize():
        # y col 0 already holds alpha*s1 + (1-alpha)*b2 (bias folded in wrapper).
        score_ref[...] = y_ref[:, 0:1] + (1.0 - alpha) * acc_ref[...]


def _gcn_norm_adj(edge_index, num_nodes):
    """Dense GCN-normalized adjacency, self loops removed (add_self_loops=False)."""
    row, col = edge_index[0], edge_index[1]
    w = (row != col).astype(jnp.float32)                  # remove_self_loops
    deg = jnp.zeros((num_nodes,), jnp.float32).at[col].add(w)
    dinv = jnp.where(deg > 0, jax.lax.rsqrt(jnp.maximum(deg, 1e-12)), 0.0)
    norm = dinv[row] * dinv[col] * w
    # message flows source(row) -> target(col):  A[col, row] = norm
    return jnp.zeros((num_nodes, num_nodes), jnp.float32).at[col, row].add(norm)


@partial(jax.jit, static_argnums=(0,))
def _gla_scores(alpha, x, edge_index, w1, b1, w2, b2, p):
    """Returns (score (N,1), topk_score (N,1), x*tanh(topk_score) (N,C))."""
    N, C = x.shape
    TM = 256
    N_pad = _round_up(N, TM)
    C_pad = _round_up(C + 1, 128)            # +1: ones-column for folded biases

    # ---- pack inputs (lane-dense, biases folded into the fused weight) -----
    x_pad = jnp.zeros((N_pad, C_pad), jnp.float32)
    x_pad = x_pad.at[:N, :C].set(x)
    x_pad = x_pad.at[:N, C].set(1.0)                                   # bias column

    inv_pnorm = jax.lax.rsqrt(jnp.sum(p * p))
    w_fused = jnp.zeros((C_pad, 128), jnp.float32)
    w_fused = w_fused.at[:C, 0].set(alpha * w1[:, 0])
    w_fused = w_fused.at[C, 0].set(alpha * b1[0, 0] + (1.0 - alpha) * b2[0, 0])
    w_fused = w_fused.at[:C, 1].set(w2[:, 0])
    w_fused = w_fused.at[:C, 2].set(p[:, 0] * inv_pnorm)

    # GCN-normalized adjacency, streamed from HBM as bf16 (accumulation in f32).
    adj = _gcn_norm_adj(edge_index, N_pad).astype(jnp.bfloat16)

    gm = N_pad // TM

    # ---- kernel 1: fused projection ----------------------------------------
    y, xg = pl.pallas_call(
        _proj_kernel,
        grid=(gm,),
        in_specs=[pl.BlockSpec((TM, C_pad), lambda i: (i, 0)),
                  pl.BlockSpec((C_pad, 128), lambda i: (0, 0))],
        out_specs=(pl.BlockSpec((TM, 128), lambda i: (i, 0)),
                   pl.BlockSpec((TM, C_pad), lambda i: (i, 0))),
        out_shape=(jax.ShapeDtypeStruct((N_pad, 128), jnp.float32),
                   jax.ShapeDtypeStruct((N_pad, C_pad), jnp.float32)),
        compiler_params=pltpu.CompilerParams(
            dimension_semantics=("parallel",),
            vmem_limit_bytes=32 * 1024 * 1024),
        cost_estimate=pl.CostEstimate(
            flops=int(2 * N_pad * C_pad * 128 + N_pad * C_pad),
            transcendentals=int(N_pad),
            bytes_accessed=int(8 * N_pad * C_pad + 4 * N_pad * 128 + 4 * C_pad * 128)),
    )(x_pad, w_fused)

    xw2 = y[:, 1:2]                                                    # (N_pad, 1)

    # ---- kernel 2: adjacency aggregation + blend ----------------------------
    TK = _pick_tile(N_pad, 2048)
    gk = N_pad // TK
    score_pad = pl.pallas_call(
        partial(_agg_kernel, alpha),
        grid=(gm, gk),
        in_specs=[pl.BlockSpec((TM, 128), lambda i, k: (i, 0)),        # y (per row tile)
                  pl.BlockSpec((TK, 1), lambda i, k: (k, 0)),          # xw2 (per K tile)
                  pl.BlockSpec((TM, TK), lambda i, k: (i, k))],        # adj bf16, pipelined
        out_specs=pl.BlockSpec((TM, 128), lambda i, k: (i, 0)),
        out_shape=jax.ShapeDtypeStruct((N_pad, 128), jnp.float32),
        scratch_shapes=[pltpu.VMEM((TM, 128), jnp.float32)],
        compiler_params=pltpu.CompilerParams(
            dimension_semantics=("parallel", "arbitrary"),
            vmem_limit_bytes=32 * 1024 * 1024),
        cost_estimate=pl.CostEstimate(
            flops=int(2 * N_pad * N_pad),
            transcendentals=0,
            bytes_accessed=int(2 * N_pad * N_pad + 8 * N_pad * 128 + 4 * N_pad * gm)),
    )(y, xw2, adj)

    score = score_pad[:N, 0:1]
    tscore = y[:N, 2:3]
    xgated = xg[:N, :C]
    return score, tscore, xgated


class GLAPool:
    """JAX/Pallas port of the PyTorch GLAPool module (deterministic synthetic init)."""

    def __init__(self, in_channels, alpha, ratio=0, key=None):
        self.in_channels = in_channels
        self.alpha = float(alpha)
        self.ratio = ratio
        if key is None:
            key = jax.random.PRNGKey(0)
        k1, k2, k3, k4 = jax.random.split(key, 4)
        bound = 1.0 / math.sqrt(in_channels)
        # score1: nn.Linear(C, 1)   (PyTorch default uniform init)
        self.w1 = jax.random.uniform(k1, (in_channels, 1), jnp.float32, -bound, bound)
        self.b1 = jax.random.uniform(k2, (1, 1), jnp.float32, -bound, bound)
        # score2: GCNConv(C, 1)     (glorot weight, zero bias)
        g = math.sqrt(6.0 / (in_channels + 1))
        self.w2 = jax.random.uniform(k3, (in_channels, 1), jnp.float32, -g, g)
        self.b2 = jnp.zeros((1, 1), jnp.float32)
        # TopK pooling projection vector
        self.p = jax.random.uniform(k4, (in_channels, 1), jnp.float32, -bound, bound)

    def __call__(self, x, edge_index, edge_attr=None, batch=None, flag=0):
        x = jnp.asarray(x, jnp.float32)
        if x.ndim == 1:
            x = x[:, None]
        N = x.shape[0]
        if batch is None:
            batch = jnp.zeros((N,), jnp.int32)

        score, tscore, xgated = _gla_scores(self.alpha, x, edge_index, self.w1,
                                            self.b1, self.w2, self.b2, self.p)
        if flag == 1:
            return score.reshape(-1, 1)

        # --- TopK pooling: per-graph node selection / edge filtering produces
        # dynamic output shapes, so it stays as host-side index glue. ----------
        # TODO(synk): replace with padded on-device jax.lax.top_k per graph to
        # avoid the device->host sync after the Pallas kernels.
        batch_np = np.asarray(batch)
        t_np = np.asarray(tscore)[:, 0]
        perm_parts = []
        for gid in np.unique(batch_np):
            idx = np.where(batch_np == gid)[0]
            n = len(idx)
            if isinstance(self.ratio, int) and self.ratio >= 1:
                k = min(self.ratio, n)
            else:
                k = int(math.ceil(self.ratio * n))
            perm_parts.append(idx[np.argsort(-t_np[idx])[:k]])
        perm = (np.concatenate(perm_parts) if perm_parts
                else np.zeros((0,), np.int64))

        x_pool = jnp.asarray(np.asarray(xgated)[perm])        # x[perm] * tanh(score[perm])
        batch_pool = jnp.asarray(batch_np[perm])

        ei = np.asarray(edge_index)
        node_map = -np.ones((N,), np.int64)
        node_map[perm] = np.arange(len(perm))
        r, c = node_map[ei[0]], node_map[ei[1]]
        mask = (r >= 0) & (c >= 0)
        edge_index_pool = jnp.asarray(np.stack([r[mask], c[mask]], axis=0).astype(np.int32))
        return x_pool, edge_index_pool, batch_pool


if __name__ == "__main__":
    key = jax.random.PRNGKey(0)
    kx, kp = jax.random.split(key)
    N, C = 8, 32
    x = jax.random.normal(kx, (N, C), jnp.float32)
    # small ring graph (bidirectional) plus one self loop (2->2) to exercise remove_self_loops
    edge_index = jnp.array(
        [[0, 1, 1, 2, 2, 3, 3, 4, 4, 5, 5, 6, 6, 7, 7, 0, 2],
         [1, 0, 2, 1, 3, 2, 4, 3, 5, 4, 6, 5, 7, 6, 0, 7, 2]], dtype=jnp.int32)

    module = GLAPool(in_channels=C, alpha=0.6, ratio=0.5, key=kp)

    # flag = 1 path: Pallas-computed node scores
    score = module(x, edge_index, flag=1)
    score = jax.block_until_ready(score)

    # pure-JAX reference check of the Pallas score / gating path
    adj_f32 = _gcn_norm_adj(edge_index, N)
    ref = (module.alpha * (x @ module.w1 + module.b1[0]) +
           (1.0 - module.alpha) * (adj_f32 @ (x @ module.w2) + module.b2[0]))
    assert np.allclose(np.asarray(score), np.asarray(ref), atol=2e-2), "score mismatch"

    _, tscore_k, xgated_k = _gla_scores(module.alpha, x, edge_index, module.w1,
                                        module.b1, module.w2, module.b2, module.p)
    t_ref = (x @ module.p) / jnp.sqrt(jnp.sum(module.p * module.p))
    gated_ref = x * jnp.tanh(t_ref)
    assert np.allclose(np.asarray(tscore_k), np.asarray(t_ref), atol=2e-2), "tscore mismatch"
    assert np.allclose(np.asarray(xgated_k), np.asarray(gated_ref), atol=2e-2), "xgated mismatch"

    # flag = 0 path: TopK pooling (x_pool, edge_index_pool, batch_pool)
    x_pool, ei_pool, batch_pool = module(x, edge_index, flag=0)
    jax.block_until_ready(x_pool)
    assert x_pool.shape == (4, C) and batch_pool.shape == (4,)

    print("KERNEL_OK")
</pallas_src>

<mosaic_0001>
module attributes {stable_mosaic.version = 11 : i64} {
  func.func @_proj_kernel(%arg0: i32, %arg1: memref<256x128xf32, #tpu.memory_space<vmem>>, %arg2: memref<128x128xf32, #tpu.memory_space<vmem>>, %arg3: memref<256x128xf32, #tpu.memory_space<vmem>>, %arg4: memref<256x128xf32, #tpu.memory_space<vmem>>) attributes {dimension_semantics = [#tpu.dimension_semantics<parallel>], iteration_bounds = array<i64: 1>, scalar_prefetch = 0 : i64, scratch_operands = 0 : i64, tpu.core_type = #tpu.core_type<tc>, window_params = [{transform_indices = @transform_0, window_bounds = array<i64: 256, 128>}, {pipeline_mode = #tpu.pipeline_mode<synchronous>, transform_indices = @transform_1, window_bounds = array<i64: 128, 128>}, {transform_indices = @transform_2, window_bounds = array<i64: 256, 128>}, {transform_indices = @transform_3, window_bounds = array<i64: 256, 128>}]} {
    %c0 = arith.constant 0 : index
    %c0_0 = arith.constant 0 : index
    %0 = vector.load %arg1[%c0, %c0_0] : memref<256x128xf32, #tpu.memory_space<vmem>>, vector<256x128xf32>
    %c0_1 = arith.constant 0 : index
    %c0_2 = arith.constant 0 : index
    %1 = vector.load %arg2[%c0_1, %c0_2] : memref<128x128xf32, #tpu.memory_space<vmem>>, vector<128x128xf32>
    %cst = arith.constant dense<0.000000e+00> : vector<256x128xf32>
    %2 = tpu.matmul %0, %1, %cst {dimension_numbers = #tpu.dot_dimension_numbers<[1], [0], [0], [1], [0, 0, 1, 1], [], []>} : vector<256x128xf32>, vector<128x128xf32>, vector<256x128xf32> -> vector<256x128xf32>
    %c0_3 = arith.constant 0 : index
    %c0_4 = arith.constant 0 : index
    %3 = vector.load %arg3[%c0_3, %c0_4] : memref<256x128xf32, #tpu.memory_space<vmem>>, vector<256x128xf32>
    tpu.vector_store %arg3[%c0_3, %c0_4], %2 {strides = array<i32>} : memref<256x128xf32, #tpu.memory_space<vmem>>, vector<256x128xf32>,
    %4 = vector.extract_strided_slice %2 {offsets = [0, 2], sizes = [256, 1], strides = [1, 1]} : vector<256x128xf32> to vector<256x1xf32>
    %5 = math.tanh %4 : vector<256x1xf32>
    %6 = vector.broadcast %5 : vector<256x1xf32> to vector<256x128xf32>
    %7 = arith.mulf %0, %6 : vector<256x128xf32>
    %c0_5 = arith.constant 0 : index
    %c0_6 = arith.constant 0 : index
    %8 = vector.load %arg4[%c0_5, %c0_6] : memref<256x128xf32, #tpu.memory_space<vmem>>, vector<256x128xf32>
    tpu.vector_store %arg4[%c0_5, %c0_6], %7 {strides = array<i32>} : memref<256x128xf32, #tpu.memory_space<vmem>>, vector<256x128xf32>,
    return
  }
  func.func @transform_0(%arg0: i32) -> (i32, i32) {
    %c0_i32 = arith.constant 0 : i32
    %c0_i32_0 = arith.constant 0 : i32
    return %arg0, %c0_i32 : i32, i32
  }
  func.func @transform_1(%arg0: i32) -> (i32, i32) {
    %c0_i32 = arith.constant 0 : i32
    %c0_i32_0 = arith.constant 0 : i32
    %c0_i32_1 = arith.constant 0 : i32
    return %c0_i32, %c0_i32_0 : i32, i32
  }
  func.func @transform_2(%arg0: i32) -> (i32, i32) {
    %c0_i32 = arith.constant 0 : i32
    %c0_i32_0 = arith.constant 0 : i32
    return %arg0, %c0_i32 : i32, i32
  }
  func.func @transform_3(%arg0: i32) -> (i32, i32) {
    %c0_i32 = arith.constant 0 : i32
    %c0_i32_0 = arith.constant 0 : i32
    return %arg0, %c0_i32 : i32, i32
  }
}

module attributes {stable_mosaic.version = 11 : i64} {
  func.func @_agg_kernel(%arg0: i32, %arg1: i32, %arg2: memref<256x128xf32, #tpu.memory_space<vmem>>, %arg3: memref<256x1xf32, #tpu.memory_space<vmem>>, %arg4: memref<256x256xbf16, #tpu.memory_space<vmem>>, %arg5: memref<256x128xf32, #tpu.memory_space<vmem>>, %arg6: memref<256x128xf32, #tpu.memory_space<vmem>>) attributes {dimension_semantics = [#tpu.dimension_semantics<parallel>, #tpu.dimension_semantics<arbitrary>], iteration_bounds = array<i64: 1, 1>, scalar_prefetch = 0 : i64, scratch_operands = 1 : i64, tpu.core_type = #tpu.core_type<tc>, window_params = [{transform_indices = @transform_0, window_bounds = array<i64: 256, 128>}, {transform_indices = @transform_1, window_bounds = array<i64: 256, 1>}, {transform_indices = @transform_2, window_bounds = array<i64: 256, 256>}, {transform_indices = @transform_3, window_bounds = array<i64: 256, 128>}]} {
    %c0_i32 = arith.constant 0 : i32
    %0 = arith.cmpi eq, %arg1, %c0_i32 : i32
    %1 = arith.extui %0 : i1 to i32
    %c0_i32_0 = arith.constant 0 : i32
    %2 = arith.cmpi ne, %1, %c0_i32_0 : i32
    scf.if %2 {
      %cst_10 = arith.constant 0.000000e+00 : f32
      %14 = vector.broadcast %cst_10 : f32 to vector<256x128xf32>
      %c0_11 = arith.constant 0 : index
      %c0_12 = arith.constant 0 : index
      %15 = vector.load %arg6[%c0_11, %c0_12] : memref<256x128xf32, #tpu.memory_space<vmem>>, vector<256x128xf32>
      tpu.vector_store %arg6[%c0_11, %c0_12], %14 {strides = array<i32>} : memref<256x128xf32, #tpu.memory_space<vmem>>, vector<256x128xf32>,
    } else {
    }
    %c0 = arith.constant 0 : index
    %c0_1 = arith.constant 0 : index
    %3 = vector.load %arg4[%c0, %c0_1] : memref<256x256xbf16, #tpu.memory_space<vmem>>, vector<256x256xbf16>
    %4 = arith.extf %3 : vector<256x256xbf16> to vector<256x256xf32>
    %c0_2 = arith.constant 0 : index
    %c0_3 = arith.constant 0 : index
    %5 = vector.load %arg3[%c0_2, %c0_3] : memref<256x1xf32, #tpu.memory_space<vmem>>, vector<256x1xf32>
    %cst = arith.constant dense<0.000000e+00> : vector<256x1xf32>
    %6 = tpu.matmul %4, %5, %cst {dimension_numbers = #tpu.dot_dimension_numbers<[1], [0], [0], [1], [0, 0, 1, 1], [], []>} : vector<256x256xf32>, vector<256x1xf32>, vector<256x1xf32> -> vector<256x1xf32>
    %c0_4 = arith.constant 0 : index
    %c0_5 = arith.constant 0 : index
    %7 = vector.load %arg6[%c0_4, %c0_5] : memref<256x128xf32, #tpu.memory_space<vmem>>, vector<256x128xf32>
    %8 = vector.broadcast %6 : vector<256x1xf32> to vector<256x128xf32>
    %9 = arith.addf %7, %8 : vector<256x128xf32>
    %c0_6 = arith.constant 0 : index
    %c0_7 = arith.constant 0 : index
    %10 = vector.load %arg6[%c0_6, %c0_7] : memref<256x128xf32, #tpu.memory_space<vmem>>, vector<256x128xf32>
    tpu.vector_store %arg6[%c0_6, %c0_7], %9 {strides = array<i32>} : memref<256x128xf32, #tpu.memory_space<vmem>>, vector<256x128xf32>,
    %c0_i32_8 = arith.constant 0 : i32
    %11 = arith.cmpi eq, %arg1, %c0_i32_8 : i32
    %12 = arith.extui %11 : i1 to i32
    %c0_i32_9 = arith.constant 0 : i32
    %13 = arith.cmpi ne, %12, %c0_i32_9 : i32
    scf.if %13 {
      %c0_10 = arith.constant 0 : index
      %c0_11 = arith.constant 0 : index
      %14 = vector.load %arg2[%c0_10, %c0_11] : memref<256x128xf32, #tpu.memory_space<vmem>>, vector<256x1xf32>
      %c0_12 = arith.constant 0 : index
      %c0_13 = arith.constant 0 : index
      %15 = vector.load %arg6[%c0_12, %c0_13] : memref<256x128xf32, #tpu.memory_space<vmem>>, vector<256x128xf32>
      %cst_14 = arith.constant 4.000000e-01 : f32
      %16 = vector.broadcast %cst_14 : f32 to vector<256x128xf32>
      %17 = arith.mulf %16, %15 : vector<256x128xf32>
      %18 = vector.broadcast %14 : vector<256x1xf32> to vector<256x128xf32>
      %19 = arith.addf %18, %17 : vector<256x128xf32>
      %c0_15 = arith.constant 0 : index
      %c0_16 = arith.constant 0 : index
      %20 = vector.load %arg5[%c0_15, %c0_16] : memref<256x128xf32, #tpu.memory_space<vmem>>, vector<256x128xf32>
      tpu.vector_store %arg5[%c0_15, %c0_16], %19 {strides = array<i32>} : memref<256x128xf32, #tpu.memory_space<vmem>>, vector<256x128xf32>,
    } else {
    }
    return
  }
  func.func @transform_0(%arg0: i32, %arg1: i32) -> (i32, i32) {
    %c0_i32 = arith.constant 0 : i32
    %c0_i32_0 = arith.constant 0 : i32
    return %arg0, %c0_i32 : i32, i32
  }
  func.func @transform_1(%arg0: i32, %arg1: i32) -> (i32, i32) {
    %c0_i32 = arith.constant 0 : i32
    %c0_i32_0 = arith.constant 0 : i32
    return %arg1, %c0_i32 : i32, i32
  }
  func.func @transform_2(%arg0: i32, %arg1: i32) -> (i32, i32) {
    %c0_i32 = arith.constant 0 : i32
    return %arg0, %arg1 : i32, i32
  }
  func.func @transform_3(%arg0: i32, %arg1: i32) -> (i32, i32) {
    %c0_i32 = arith.constant 0 : i32
    %c0_i32_0 = arith.constant 0 : i32
    return %arg0, %c0_i32 : i32, i32
  }
}

</mosaic_0001>

<llo_original>
// kernel: _gla_scores.2
$region0: #{_gla_scores.2}
  #allocation0 [shape = 'u32[]', space=smem, size = 0x4, offset = 0x4, fixed_abs, tag = 'smem constant byte address 0x4 - core index']
  #allocation1 [shape = 'u32[144,128]{1,0:T(1,128)}', space=vmem, size = 0x12000, scoped, tag = 'internal scratch']
  %s0 = inlined_call_operand.vmem [shape: f32[256,128], index: 0, kind: input, shape index: {}]
  %s1 = inlined_call_operand.vmem [shape: f32[128,128], index: 1, kind: input, shape index: {}]
  %s2 = inlined_call_operand.vmem [shape: f32[256,128], index: 2, kind: output, shape index: {0}]
  %s3 = inlined_call_operand.vmem [shape: f32[256,128], index: 3, kind: output, shape index: {1}]
  %4 = xla_tuple %s2, %s3
  %s5 = sld [smem:[#allocation0]]
  $region26: #{_gla_scores.2} parent=0
    _
  %s7 = ssub.s32 1, %s5
  %s8 = scalar_select 0, %s7, %s5
  // Predicated region
  $region2: #{_gla_scores.2} parent=0 // pred_check
    _
  $region3: #{_gla_scores.2} parent=0 // pred_check_branch
    %10 = sbr.rel (0) target = $region5
  $region4: #{_gla_scores.2} parent=0 // pred_region
    _
  $region5: #{_gla_scores.2} parent=0 // pred_fallthru
    _
  // Predicated region
  $region6: #{_gla_scores.2} parent=0 // pred_check
    _
  $region7: #{_gla_scores.2} parent=0 // pred_check_branch
    %12 = sbr.rel (0) target = $region9
  $region8: #{_gla_scores.2} parent=0 // pred_region
    _
  $region9: #{_gla_scores.2} parent=0 // pred_fallthru
    _
  %v13 = vld [vmem:[%s0] sm:$0xff]
  %v14 = vld [vmem:[%s0 + $0x8] sm:$0xff]
  %v15 = vld [vmem:[%s0 + $0x10] sm:$0xff]
  %v16 = vld [vmem:[%s0 + $0x18] sm:$0xff]
  %v17 = vld [vmem:[%s0 + $0x20] sm:$0xff]
  %v18 = vld [vmem:[%s0 + $0x28] sm:$0xff]
  %v19 = vld [vmem:[%s0 + $0x30] sm:$0xff]
  %v20 = vld [vmem:[%s0 + $0x38] sm:$0xff]
  %v21 = vld [vmem:[%s0 + $0x40] sm:$0xff]
  %v22 = vld [vmem:[%s0 + $0x48] sm:$0xff]
  %v23 = vld [vmem:[%s0 + $0x50] sm:$0xff]
  %v24 = vld [vmem:[%s0 + $0x58] sm:$0xff]
  %v25 = vld [vmem:[%s0 + $0x60] sm:$0xff]
  %v26 = vld [vmem:[%s0 + $0x68] sm:$0xff]
  %v27 = vld [vmem:[%s0 + $0x70] sm:$0xff]
  %v28 = vld [vmem:[%s0 + $0x78] sm:$0xff]
  %v29 = vld [vmem:[%s0 + $0x80] sm:$0xff]
  %v30 = vld [vmem:[%s0 + $0x88] sm:$0xff]
  %v31 = vld [vmem:[%s0 + $0x90] sm:$0xff]
  %v32 = vld [vmem:[%s0 + $0x98] sm:$0xff]
  %v33 = vld [vmem:[%s0 + $0xa0] sm:$0xff]
  %v34 = vld [vmem:[%s0 + $0xa8] sm:$0xff]
  %v35 = vld [vmem:[%s0 + $0xb0] sm:$0xff]
  %v36 = vld [vmem:[%s0 + $0xb8] sm:$0xff]
  %v37 = vld [vmem:[%s0 + $0xc0] sm:$0xff]
  %v38 = vld [vmem:[%s0 + $0xc8] sm:$0xff]
  %v39 = vld [vmem:[%s0 + $0xd0] sm:$0xff]
  %v40 = vld [vmem:[%s0 + $0xd8] sm:$0xff]
  %v41 = vld [vmem:[%s0 + $0xe0] sm:$0xff]
  %v42 = vld [vmem:[%s0 + $0xe8] sm:$0xff]
  %v43 = vld [vmem:[%s0 + $0xf0] sm:$0xff]
  %v44 = vld [vmem:[%s0 + $0xf8] sm:$0xff]
  %v45 = vld [vmem:[%s1] sm:$0xff]
  %v46 = vld [vmem:[%s1 + $0x8] sm:$0xff]
  %v47 = vld [vmem:[%s1 + $0x10] sm:$0xff]
  %v48 = vld [vmem:[%s1 + $0x18] sm:$0xff]
  %v49 = vld [vmem:[%s1 + $0x20] sm:$0xff]
  %v50 = vld [vmem:[%s1 + $0x28] sm:$0xff]
  %v51 = vld [vmem:[%s1 + $0x30] sm:$0xff]
  %v52 = vld [vmem:[%s1 + $0x38] sm:$0xff]
  %v53 = vld [vmem:[%s1 + $0x40] sm:$0xff]
  %v54 = vld [vmem:[%s1 + $0x48] sm:$0xff]
  %v55 = vld [vmem:[%s1 + $0x50] sm:$0xff]
  %v56 = vld [vmem:[%s1 + $0x58] sm:$0xff]
  %v57 = vld [vmem:[%s1 + $0x60] sm:$0xff]
  %v58 = vld [vmem:[%s1 + $0x68] sm:$0xff]
  %v59 = vld [vmem:[%s1 + $0x70] sm:$0xff]
  %v60 = vld [vmem:[%s1 + $0x78] sm:$0xff]
  %61 = vmatprep.subr.mxu0 0.0
  %62 = vmatpush1.msra.mxu0 %v45
  %63 = vmatprep.subr.mxu0 0.0
  %64 = vmatpush1.msra.mxu0 %v46
  %65 = vmatprep.subr.mxu0 0.0
  %66 = vmatpush1.msra.mxu0 %v47
  %67 = vmatprep.subr.mxu0 0.0
  %68 = vmatpush1.msra.mxu0 %v48
  %69 = vmatprep.subr.mxu0 0.0
  %70 = vmatpush1.msra.mxu0 %v49
  %71 = vmatprep.subr.mxu0 0.0
  %72 = vmatpush1.msra.mxu0 %v50
  %73 = vmatprep.subr.mxu0 0.0
  %74 = vmatpush1.msra.mxu0 %v51
  %75 = vmatprep.subr.mxu0 0.0
  %76 = vmatpush1.msra.mxu0 %v52
  %77 = vmatprep.subr.mxu0 0.0
  %78 = vmatpush1.msra.mxu0 %v53
  %79 = vmatprep.subr.mxu0 0.0
  %80 = vmatpush1.msra.mxu0 %v54
  %81 = vmatprep.subr.mxu0 0.0
  %82 = vmatpush1.msra.mxu0 %v55
  %83 = vmatprep.subr.mxu0 0.0
  %84 = vmatpush1.msra.mxu0 %v56
  %85 = vmatprep.subr.mxu0 0.0
  %86 = vmatpush1.msra.mxu0 %v57
  %87 = vmatprep.subr.mxu0 0.0
  %88 = vmatpush1.msra.mxu0 %v58
  %89 = vmatprep.subr.mxu0 0.0
  %90 = vmatpush1.msra.mxu0 %v59
  %91 = vmatprep.subr.mxu0 0.0
  %92 = vmatpush1.msra.mxu0 %v60
  %93 = vmatprep.subr.mxu0 0.0
  %94 = vmatpush1.msra.mxu0 0.0
  %95 = vmatprep.subr.mxu0 0.0
  %96 = vmatpush1.msra.mxu0 0.0
  %97 = vmatprep.subr.mxu0 0.0
  %98 = vmatpush1.msra.mxu0 0.0
  %99 = vmatprep.subr.mxu0 0.0
  %100 = vmatpush1.msra.mxu0 0.0
  %101 = vmatprep.subr.mxu0 0.0
  %102 = vmatpush1.msra.mxu0 0.0
  %103 = vmatprep.subr.mxu0 0.0
  %104 = vmatpush1.msra.mxu0 0.0
  %105 = vmatprep.subr.mxu0 0.0
  %106 = vmatpush1.msra.mxu0 0.0
  %107 = vmatprep.subr.mxu0 0.0
  %108 = vmatpush1.msra.mxu0 0.0
  %109 = vmatprep.subr.mxu0 0.0
  %110 = vmatpush1.msra.mxu0 0.0
  %111 = vmatprep.subr.mxu0 0.0
  %112 = vmatpush1.msra.mxu0 0.0
  %113 = vmatprep.subr.mxu0 0.0
  %114 = vmatpush1.msra.mxu0 0.0
  %115 = vmatprep.subr.mxu0 0.0
  %116 = vmatpush1.msra.mxu0 0.0
  %117 = vmatprep.subr.mxu0 0.0
  %118 = vmatpush1.msra.mxu0 0.0
  %119 = vmatprep.subr.mxu0 0.0
  %120 = vmatpush1.msra.mxu0 0.0
  %121 = vmatprep.subr.mxu0 0.0
  %122 = vmatpush1.msra.mxu0 0.0
  %123 = vmatprep.subr.mxu0 0.0
  %124 = vmatpush1.msra.mxu0 0.0
  %125 = vmatprep.mubr.f32.mxu0 0.0
  %126 = vmatmul.mubr.f32.gmra.mrb[0].mxu0 %v13
  %v127 = vpop.f32.mrb[0].mxu0
  %v128 = vadd.f32 0.0, %v127
  %v129 = vpop.f32.mrb[0].mxu0
  %130 = vmatprep.mubr.f32.mxu0 0.0
  %131 = vmatmul.mubr.f32.gmra.mrb[0].mxu0 %v14
  %v132 = vpop.f32.mrb[0].mxu0
  %v133 = vadd.f32 0.0, %v132
  %v134 = vpop.f32.mrb[0].mxu0
  %135 = vmatprep.mubr.f32.mxu0 0.0
  %136 = vmatmul.mubr.f32.gmra.mrb[0].mxu0 %v15
  %v137 = vpop.f32.mrb[0].mxu0
  %v138 = vadd.f32 0.0, %v137
  %v139 = vpop.f32.mrb[0].mxu0
  %140 = vmatprep.mubr.f32.mxu0 0.0
  %141 = vmatmul.mubr.f32.gmra.mrb[0].mxu0 %v16
  %v142 = vpop.f32.mrb[0].mxu0
  %v143 = vadd.f32 0.0, %v142
  %v144 = vpop.f32.mrb[0].mxu0
  %145 = vmatprep.mubr.f32.mxu0 0.0
  %146 = vmatmul.mubr.f32.gmra.mrb[0].mxu0 %v17
  %v147 = vpop.f32.mrb[0].mxu0
  %v148 = vadd.f32 0.0, %v147
  %v149 = vpop.f32.mrb[0].mxu0
  %150 = vmatprep.mubr.f32.mxu0 0.0
  %151 = vmatmul.mubr.f32.gmra.mrb[0].mxu0 %v18
  %v152 = vpop.f32.mrb[0].mxu0
  %v153 = vadd.f32 0.0, %v152
  %v154 = vpop.f32.mrb[0].mxu0
  %155 = vmatprep.mubr.f32.mxu0 0.0
  %156 = vmatmul.mubr.f32.gmra.mrb[0].mxu0 %v19
  %v157 = vpop.f32.mrb[0].mxu0
  %v158 = vadd.f32 0.0, %v157
  %v159 = vpop.f32.mrb[0].mxu0
  %160 = vmatprep.mubr.f32.mxu0 0.0
  %161 = vmatmul.mubr.f32.gmra.mrb[0].mxu0 %v20
  %v162 = vpop.f32.mrb[0].mxu0
  %v163 = vadd.f32 0.0, %v162
  %v164 = vpop.f32.mrb[0].mxu0
  %165 = vmatprep.mubr.f32.mxu0 0.0
  %166 = vmatmul.mubr.f32.gmra.mrb[0].mxu0 %v21
  %v167 = vpop.f32.mrb[0].mxu0
  %v168 = vadd.f32 0.0, %v167
  %v169 = vpop.f32.mrb[0].mxu0
  %170 = vmatprep.mubr.f32.mxu0 0.0
  %171 = vmatmul.mubr.f32.gmra.mrb[0].mxu0 %v22
  %v172 = vpop.f32.mrb[0].mxu0
  %v173 = vadd.f32 0.0, %v172
  %v174 = vpop.f32.mrb[0].mxu0
  %175 = vmatprep.mubr.f32.mxu0 0.0
  %176 = vmatmul.mubr.f32.gmra.mrb[0].mxu0 %v23
  %v177 = vpop.f32.mrb[0].mxu0
  %v178 = vadd.f32 0.0, %v177
  %v179 = vpop.f32.mrb[0].mxu0
  %180 = vmatprep.mubr.f32.mxu0 0.0
  %181 = vmatmul.mubr.f32.gmra.mrb[0].mxu0 %v24
  %v182 = vpop.f32.mrb[0].mxu0
  %v183 = vadd.f32 0.0, %v182
  %v184 = vpop.f32.mrb[0].mxu0
  %185 = vmatprep.mubr.f32.mxu0 0.0
  %186 = vmatmul.mubr.f32.gmra.mrb[0].mxu0 %v25
  %v187 = vpop.f32.mrb[0].mxu0
  %v188 = vadd.f32 0.0, %v187
  %v189 = vpop.f32.mrb[0].mxu0
  %190 = vmatprep.mubr.f32.mxu0 0.0
  %191 = vmatmul.mubr.f32.gmra.mrb[0].mxu0 %v26
  %v192 = vpop.f32.mrb[0].mxu0
  %v193 = vadd.f32 0.0, %v192
  %v194 = vpop.f32.mrb[0].mxu0
  %195 = vmatprep.mubr.f32.mxu0 0.0
  %196 = vmatmul.mubr.f32.gmra.mrb[0].mxu0 %v27
  %v197 = vpop.f32.mrb[0].mxu0
  %v198 = vadd.f32 0.0, %v197
  %v199 = vpop.f32.mrb[0].mxu0
  %200 = vmatprep.mubr.f32.mxu0 0.0
  %201 = vmatmul.mubr.f32.gmra.mrb[0].mxu0 %v28
  %v202 = vpop.f32.mrb[0].mxu0
  %v203 = vadd.f32 0.0, %v202
  %v204 = vpop.f32.mrb[0].mxu0
  %205 = vmatprep.mubr.f32.mxu0 0.0
  %206 = vmatmul.mubr.f32.gmra.mrb[0].mxu0 %v29
  %v207 = vpop.f32.mrb[0].mxu0
  %v208 = vadd.f32 0.0, %v207
  %v209 = vpop.f32.mrb[0].mxu0
  %210 = vmatprep.mubr.f32.mxu0 0.0
  %211 = vmatmul.mubr.f32.gmra.mrb[0].mxu0 %v30
  %v212 = vpop.f32.mrb[0].mxu0
  %v213 = vadd.f32 0.0, %v212
  %v214 = vpop.f32.mrb[0].mxu0
  %215 = vmatprep.mubr.f32.mxu0 0.0
  %216 = vmatmul.mubr.f32.gmra.mrb[0].mxu0 %v31
  %v217 = vpop.f32.mrb[0].mxu0
  %v218 = vadd.f32 0.0, %v217
  %v219 = vpop.f32.mrb[0].mxu0
  %220 = vmatprep.mubr.f32.mxu0 0.0
  %221 = vmatmul.mubr.f32.gmra.mrb[0].mxu0 %v32
  %v222 = vpop.f32.mrb[0].mxu0
  %v223 = vadd.f32 0.0, %v222
  %v224 = vpop.f32.mrb[0].mxu0
  %225 = vmatprep.mubr.f32.mxu0 0.0
  %226 = vmatmul.mubr.f32.gmra.mrb[0].mxu0 %v33
  %v227 = vpop.f32.mrb[0].mxu0
  %v228 = vadd.f32 0.0, %v227
  %v229 = vpop.f32.mrb[0].mxu0
  %230 = vmatprep.mubr.f32.mxu0 0.0
  %231 = vmatmul.mubr.f32.gmra.mrb[0].mxu0 %v34
  %v232 = vpop.f32.mrb[0].mxu0
  %v233 = vadd.f32 0.0, %v232
  %v234 = vpop.f32.mrb[0].mxu0
  %235 = vmatprep.mubr.f32.mxu0 0.0
  %236 = vmatmul.mubr.f32.gmra.mrb[0].mxu0 %v35
  %v237 = vpop.f32.mrb[0].mxu0
  %v238 = vadd.f32 0.0, %v237
  %v239 = vpop.f32.mrb[0].mxu0
  %240 = vmatprep.mubr.f32.mxu0 0.0
  %241 = vmatmul.mubr.f32.gmra.mrb[0].mxu0 %v36
  %v242 = vpop.f32.mrb[0].mxu0
  %v243 = vadd.f32 0.0, %v242
  %v244 = vpop.f32.mrb[0].mxu0
  %245 = vmatprep.mubr.f32.mxu0 0.0
  %246 = vmatmul.mubr.f32.gmra.mrb[0].mxu0 %v37
  %v247 = vpop.f32.mrb[0].mxu0
  %v248 = vadd.f32 0.0, %v247
  %v249 = vpop.f32.mrb[0].mxu0
  %250 = vmatprep.mubr.f32.mxu0 0.0
  %251 = vmatmul.mubr.f32.gmra.mrb[0].mxu0 %v38
  %v252 = vpop.f32.mrb[0].mxu0
  %v253 = vadd.f32 0.0, %v252
  %v254 = vpop.f32.mrb[0].mxu0
  %255 = vmatprep.mubr.f32.mxu0 0.0
  %256 = vmatmul.mubr.f32.gmra.mrb[0].mxu0 %v39
  %v257 = vpop.f32.mrb[0].mxu0
  %v258 = vadd.f32 0.0, %v257
  %v259 = vpop.f32.mrb[0].mxu0
  %260 = vmatprep.mubr.f32.mxu0 0.0
  %261 = vmatmul.mubr.f32.gmra.mrb[0].mxu0 %v40
  %v262 = vpop.f32.mrb[0].mxu0
  %v263 = vadd.f32 0.0, %v262
  %v264 = vpop.f32.mrb[0].mxu0
  %265 = vmatprep.mubr.f32.mxu0 0.0
  %266 = vmatmul.mubr.f32.gmra.mrb[0].mxu0 %v41
  %v267 = vpop.f32.mrb[0].mxu0
  %v268 = vadd.f32 0.0, %v267
  %v269 = vpop.f32.mrb[0].mxu0
  %270 = vmatprep.mubr.f32.mxu0 0.0
  %271 = vmatmul.mubr.f32.gmra.mrb[0].mxu0 %v42
  %v272 = vpop.f32.mrb[0].mxu0
  %v273 = vadd.f32 0.0, %v272
  %v274 = vpop.f32.mrb[0].mxu0
  %275 = vmatprep.mubr.f32.mxu0 0.0
  %276 = vmatmul.mubr.f32.gmra.mrb[0].mxu0 %v43
  %v277 = vpop.f32.mrb[0].mxu0
  %v278 = vadd.f32 0.0, %v277
  %v279 = vpop.f32.mrb[0].mxu0
  %280 = vmatprep.mubr.f32.mxu0 0.0
  %281 = vmatmul.mubr.f32.gmra.mrb[0].mxu0 %v44
  %v282 = vpop.f32.mrb[0].mxu0
  %v283 = vadd.f32 0.0, %v282
  %v284 = vpop.f32.mrb[0].mxu0
  %285 = vdwg.mxu0
  %286 = vst [vmem:[%s2] sm:$0xff] %v128
  %287 = vst [vmem:[%s2 + $0x8] sm:$0xff] %v133
  %288 = vst [vmem:[%s2 + $0x10] sm:$0xff] %v138
  %289 = vst [vmem:[%s2 + $0x18] sm:$0xff] %v143
  %290 = vst [vmem:[%s2 + $0x20] sm:$0xff] %v148
  %291 = vst [vmem:[%s2 + $0x28] sm:$0xff] %v153
  %292 = vst [vmem:[%s2 + $0x30] sm:$0xff] %v158
  %293 = vst [vmem:[%s2 + $0x38] sm:$0xff] %v163
  %294 = vst [vmem:[%s2 + $0x40] sm:$0xff] %v168
  %295 = vst [vmem:[%s2 + $0x48] sm:$0xff] %v173
  %296 = vst [vmem:[%s2 + $0x50] sm:$0xff] %v178
  %297 = vst [vmem:[%s2 + $0x58] sm:$0xff] %v183
  %298 = vst [vmem:[%s2 + $0x60] sm:$0xff] %v188
  %299 = vst [vmem:[%s2 + $0x68] sm:$0xff] %v193
  %300 = vst [vmem:[%s2 + $0x70] sm:$0xff] %v198
  %301 = vst [vmem:[%s2 + $0x78] sm:$0xff] %v203
  %302 = vst [vmem:[%s2 + $0x80] sm:$0xff] %v208
  %303 = vst [vmem:[%s2 + $0x88] sm:$0xff] %v213
  %304 = vst [vmem:[%s2 + $0x90] sm:$0xff] %v218
  %305 = vst [vmem:[%s2 + $0x98] sm:$0xff] %v223
  %306 = vst [vmem:[%s2 + $0xa0] sm:$0xff] %v228
  %307 = vst [vmem:[%s2 + $0xa8] sm:$0xff] %v233
  %308 = vst [vmem:[%s2 + $0xb0] sm:$0xff] %v238
  %309 = vst [vmem:[%s2 + $0xb8] sm:$0xff] %v243
  %310 = vst [vmem:[%s2 + $0xc0] sm:$0xff] %v248
  %311 = vst [vmem:[%s2 + $0xc8] sm:$0xff] %v253
  %312 = vst [vmem:[%s2 + $0xd0] sm:$0xff] %v258
  %313 = vst [vmem:[%s2 + $0xd8] sm:$0xff] %v263
  %314 = vst [vmem:[%s2 + $0xe0] sm:$0xff] %v268
  %315 = vst [vmem:[%s2 + $0xe8] sm:$0xff] %v273
  %316 = vst [vmem:[%s2 + $0xf0] sm:$0xff] %v278
  %317 = vst [vmem:[%s2 + $0xf8] sm:$0xff] %v283
  %v318 = vtanh.pop %v128
  %v319 = vtanh.pop %v133
  %v320 = vtanh.pop %v138
  %v321 = vtanh.pop %v143
  %v322 = vtanh.pop %v148
  %v323 = vtanh.pop %v153
  %v324 = vtanh.pop %v158
  %v325 = vtanh.pop %v163
  %v326 = vtanh.pop %v168
  %v327 = vtanh.pop %v173
  %v328 = vtanh.pop %v178
  %v329 = vtanh.pop %v183
  %v330 = vtanh.pop %v188
  %v331 = vtanh.pop %v193
  %v332 = vtanh.pop %v198
  %v333 = vtanh.pop %v203
  %v334 = vtanh.pop %v208
  %v335 = vtanh.pop %v213
  %v336 = vtanh.pop %v218
  %v337 = vtanh.pop %v223
  %v338 = vtanh.pop %v228
  %v339 = vtanh.pop %v233
  %v340 = vtanh.pop %v238
  %v341 = vtanh.pop %v243
  %v342 = vtanh.pop %v248
  %v343 = vtanh.pop %v253
  %v344 = vtanh.pop %v258
  %v345 = vtanh.pop %v263
  %v346 = vtanh.pop %v268
  %v347 = vtanh.pop %v273
  %v348 = vtanh.pop %v278
  %v349 = vtanh.pop %v283
  %351 = vset.pattern.permute.xlu0 2
  %352 = vperm.xlu0 %351, %v318
  %v353 = vpop.permute.xlu0 %352
  %356 = vset.pattern.permute.xlu0 2
  %357 = vperm.xlu0 %356, %v319
  %v358 = vpop.permute.xlu0 %357
  %361 = vset.pattern.permute.xlu0 2
  %362 = vperm.xlu0 %361, %v320
  %v363 = vpop.permute.xlu0 %362
  %366 = vset.pattern.permute.xlu0 2
  %367 = vperm.xlu0 %366, %v321
  %v368 = vpop.permute.xlu0 %367
  %371 = vset.pattern.permute.xlu0 2
  %372 = vperm.xlu0 %371, %v322
  %v373 = vpop.permute.xlu0 %372
  %376 = vset.pattern.permute.xlu0 2
  %377 = vperm.xlu0 %376, %v323
  %v378 = vpop.permute.xlu0 %377
  %381 = vset.pattern.permute.xlu0 2
  %382 = vperm.xlu0 %381, %v324
  %v383 = vpop.permute.xlu0 %382
  %386 = vset.pattern.permute.xlu0 2
  %387 = vperm.xlu0 %386, %v325
  %v388 = vpop.permute.xlu0 %387
  %391 = vset.pattern.permute.xlu0 2
  %392 = vperm.xlu0 %391, %v326
  %v393 = vpop.permute.xlu0 %392
  %396 = vset.pattern.permute.xlu0 2
  %397 = vperm.xlu0 %396, %v327
  %v398 = vpop.permute.xlu0 %397
  %401 = vset.pattern.permute.xlu0 2
  %402 = vperm.xlu0 %401, %v328
  %v403 = vpop.permute.xlu0 %402
  %406 = vset.pattern.permute.xlu0 2
  %407 = vperm.xlu0 %406, %v329
  %v408 = vpop.permute.xlu0 %407
  %411 = vset.pattern.permute.xlu0 2
  %412 = vperm.xlu0 %411, %v330
  %v413 = vpop.permute.xlu0 %412
  %416 = vset.pattern.permute.xlu0 2
  %417 = vperm.xlu0 %416, %v331
  %v418 = vpop.permute.xlu0 %417
  %421 = vset.pattern.permute.xlu0 2
  %422 = vperm.xlu0 %421, %v332
  %v423 = vpop.permute.xlu0 %422
  %426 = vset.pattern.permute.xlu0 2
  %427 = vperm.xlu0 %426, %v333
  %v428 = vpop.permute.xlu0 %427
  %431 = vset.pattern.permute.xlu0 2
  %432 = vperm.xlu0 %431, %v334
  %v433 = vpop.permute.xlu0 %432
  %436 = vset.pattern.permute.xlu0 2
  %437 = vperm.xlu0 %436, %v335
  %v438 = vpop.permute.xlu0 %437
  %441 = vset.pattern.permute.xlu0 2
  %442 = vperm.xlu0 %441, %v336
  %v443 = vpop.permute.xlu0 %442
  %446 = vset.pattern.permute.xlu0 2
  %447 = vperm.xlu0 %446, %v337
  %v448 = vpop.permute.xlu0 %447
  %451 = vset.pattern.permute.xlu0 2
  %452 = vperm.xlu0 %451, %v338
  %v453 = vpop.permute.xlu0 %452
  %456 = vset.pattern.permute.xlu0 2
  %457 = vperm.xlu0 %456, %v339
  %v458 = vpop.permute.xlu0 %457
  %461 = vset.pattern.permute.xlu0 2
  %462 = vperm.xlu0 %461, %v340
  %v463 = vpop.permute.xlu0 %462
  %466 = vset.pattern.permute.xlu0 2
  %467 = vperm.xlu0 %466, %v341
  %v468 = vpop.permute.xlu0 %467
  %471 = vset.pattern.permute.xlu0 2
  %472 = vperm.xlu0 %471, %v342
  %v473 = vpop.permute.xlu0 %472
  %476 = vset.pattern.permute.xlu0 2
  %477 = vperm.xlu0 %476, %v343
  %v478 = vpop.permute.xlu0 %477
  %481 = vset.pattern.permute.xlu0 2
  %482 = vperm.xlu0 %481, %v344
  %v483 = vpop.permute.xlu0 %482
  %486 = vset.pattern.permute.xlu0 2
  %487 = vperm.xlu0 %486, %v345
  %v488 = vpop.permute.xlu0 %487
  %491 = vset.pattern.permute.xlu0 2
  %492 = vperm.xlu0 %491, %v346
  %v493 = vpop.permute.xlu0 %492
  %496 = vset.pattern.permute.xlu0 2
  %497 = vperm.xlu0 %496, %v347
  %v498 = vpop.permute.xlu0 %497
  %501 = vset.pattern.permute.xlu0 2
  %502 = vperm.xlu0 %501, %v348
  %v503 = vpop.permute.xlu0 %502
  %506 = vset.pattern.permute.xlu0 2
  %507 = vperm.xlu0 %506, %v349
  %v508 = vpop.permute.xlu0 %507
  %v510 = vmul.f32 %v13, %v353
  %v511 = vmul.f32 %v14, %v358
  %v512 = vmul.f32 %v15, %v363
  %v513 = vmul.f32 %v16, %v368
  %v514 = vmul.f32 %v17, %v373
  %v515 = vmul.f32 %v18, %v378
  %v516 = vmul.f32 %v19, %v383
  %v517 = vmul.f32 %v20, %v388
  %v518 = vmul.f32 %v21, %v393
  %v519 = vmul.f32 %v22, %v398
  %v520 = vmul.f32 %v23, %v403
  %v521 = vmul.f32 %v24, %v408
  %v522 = vmul.f32 %v25, %v413
  %v523 = vmul.f32 %v26, %v418
  %v524 = vmul.f32 %v27, %v423
  %v525 = vmul.f32 %v28, %v428
  %v526 = vmul.f32 %v29, %v433
  %v527 = vmul.f32 %v30, %v438
  %v528 = vmul.f32 %v31, %v443
  %v529 = vmul.f32 %v32, %v448
  %v530 = vmul.f32 %v33, %v453
  %v531 = vmul.f32 %v34, %v458
  %v532 = vmul.f32 %v35, %v463
  %v533 = vmul.f32 %v36, %v468
  %v534 = vmul.f32 %v37, %v473
  %v535 = vmul.f32 %v38, %v478
  %v536 = vmul.f32 %v39, %v483
  %v537 = vmul.f32 %v40, %v488
  %v538 = vmul.f32 %v41, %v493
  %v539 = vmul.f32 %v42, %v498
  %v540 = vmul.f32 %v43, %v503
  %v541 = vmul.f32 %v44, %v508
  %542 = vst [vmem:[%s3] sm:$0xff] %v510
  %543 = vst [vmem:[%s3 + $0x8] sm:$0xff] %v511
  %544 = vst [vmem:[%s3 + $0x10] sm:$0xff] %v512
  %545 = vst [vmem:[%s3 + $0x18] sm:$0xff] %v513
  %546 = vst [vmem:[%s3 + $0x20] sm:$0xff] %v514
  %547 = vst [vmem:[%s3 + $0x28] sm:$0xff] %v515
  %548 = vst [vmem:[%s3 + $0x30] sm:$0xff] %v516
  %549 = vst [vmem:[%s3 + $0x38] sm:$0xff] %v517
  %550 = vst [vmem:[%s3 + $0x40] sm:$0xff] %v518
  %551 = vst [vmem:[%s3 + $0x48] sm:$0xff] %v519
  %552 = vst [vmem:[%s3 + $0x50] sm:$0xff] %v520
  %553 = vst [vmem:[%s3 + $0x58] sm:$0xff] %v521
  %554 = vst [vmem:[%s3 + $0x60] sm:$0xff] %v522
  %555 = vst [vmem:[%s3 + $0x68] sm:$0xff] %v523
  %556 = vst [vmem:[%s3 + $0x70] sm:$0xff] %v524
  %557 = vst [vmem:[%s3 + $0x78] sm:$0xff] %v525
  %558 = vst [vmem:[%s3 + $0x80] sm:$0xff] %v526
  %559 = vst [vmem:[%s3 + $0x88] sm:$0xff] %v527
  %560 = vst [vmem:[%s3 + $0x90] sm:$0xff] %v528
  %561 = vst [vmem:[%s3 + $0x98] sm:$0xff] %v529
  %562 = vst [vmem:[%s3 + $0xa0] sm:$0xff] %v530
  %563 = vst [vmem:[%s3 + $0xa8] sm:$0xff] %v531
  %564 = vst [vmem:[%s3 + $0xb0] sm:$0xff] %v532
  %565 = vst [vmem:[%s3 + $0xb8] sm:$0xff] %v533
  %566 = vst [vmem:[%s3 + $0xc0] sm:$0xff] %v534
  %567 = vst [vmem:[%s3 + $0xc8] sm:$0xff] %v535
  %568 = vst [vmem:[%s3 + $0xd0] sm:$0xff] %v536
  %569 = vst [vmem:[%s3 + $0xd8] sm:$0xff] %v537
  %570 = vst [vmem:[%s3 + $0xe0] sm:$0xff] %v538
  %571 = vst [vmem:[%s3 + $0xe8] sm:$0xff] %v539
  %572 = vst [vmem:[%s3 + $0xf0] sm:$0xff] %v540
  %573 = vst [vmem:[%s3 + $0xf8] sm:$0xff] %v541
  // Predicated region
  $region10: #{_gla_scores.2} parent=0 // pred_check
    _
  $region11: #{_gla_scores.2} parent=0 // pred_check_branch
    %575 = sbr.rel (0) target = $region13
  $region12: #{_gla_scores.2} parent=0 // pred_region
    _
  $region13: #{_gla_scores.2} parent=0 // pred_fallthru
    _
  // Predicated region
  $region14: #{_gla_scores.2} parent=0 // pred_check
    _
  $region15: #{_gla_scores.2} parent=0 // pred_check_branch
    %577 = sbr.rel (0) target = $region17
  $region16: #{_gla_scores.2} parent=0 // pred_region
    _
  $region17: #{_gla_scores.2} parent=0 // pred_fallthru
    _
  // Predicated region
  $region18: #{_gla_scores.2} parent=0 // pred_check
    _
  $region19: #{_gla_scores.2} parent=0 // pred_check_branch
    %579 = sbr.rel (0) target = $region21
  $region20: #{_gla_scores.2} parent=0 // pred_region
    _
  $region21: #{_gla_scores.2} parent=0 // pred_fallthru
    _
  // Predicated region
  $region22: #{_gla_scores.2} parent=0 // pred_check
    _
  $region23: #{_gla_scores.2} parent=0 // pred_check_branch
    %581 = sbr.rel (0) target = $region25
  $region24: #{_gla_scores.2} parent=0 // pred_region
    _
  $region25: #{_gla_scores.2} parent=0 // pred_fallthru
    _

// kernel: _gla_scores.3
$region0: #{_gla_scores.3}
  #allocation0 [shape = 'u32[]', space=smem, size = 0x4, offset = 0x4, fixed_abs, tag = 'smem constant byte address 0x4 - core index']
  #allocation1 [shape = 'u32[144,128]{1,0:T(1,128)}', space=vmem, size = 0x12000, scoped, tag = 'internal scratch']
  #allocation2 [shape = 'f32[256,128]{1,0:T(8,128)}', space=vmem, size = 0x20000, scoped, tag = 'scratch operand']
  %s0 = inlined_call_operand.vmem [shape: f32[256,128], index: 0, kind: input, shape index: {}]
  %s1 = inlined_call_operand.vmem [shape: f32[256,1], index: 1, kind: input, shape index: {}]
  %s2 = inlined_call_operand.vmem [shape: bf16[256,256], index: 2, kind: input, shape index: {}]
  %s3 = inlined_call_operand.vmem [shape: f32[256,128], index: 3, kind: output, shape index: {}]
  %s4 = sld [smem:[#allocation0]]
  $region30: #{_gla_scores.3} parent=0
    _
  %s6 = ssub.s32 1, %s4
  %s7 = scalar_select 0, %s6, %s4
  // Predicated region
  $region2: #{_gla_scores.3} parent=0 // pred_check
    _
  $region3: #{_gla_scores.3} parent=0 // pred_check_branch
    %9 = sbr.rel (0) target = $region5
  $region4: #{_gla_scores.3} parent=0 // pred_region
    _
  $region5: #{_gla_scores.3} parent=0 // pred_fallthru
    _
  // Predicated region
  $region6: #{_gla_scores.3} parent=0 // pred_check
    _
  $region7: #{_gla_scores.3} parent=0 // pred_check_branch
    %11 = sbr.rel (0) target = $region9
  $region8: #{_gla_scores.3} parent=0 // pred_region
    _
  $region9: #{_gla_scores.3} parent=0 // pred_fallthru
    _
  // Predicated region
  $region10: #{_gla_scores.3} parent=0 // pred_check
    _
  $region11: #{_gla_scores.3} parent=0 // pred_check_branch
    %13 = sbr.rel (0) target = $region13
  $region12: #{_gla_scores.3} parent=0 // pred_region
    _
  $region13: #{_gla_scores.3} parent=0 // pred_fallthru
    _
  %p14 = scmp.eq.s32.totalorder 0, 0
  // Predicated region
  $region14: #{_gla_scores.3} parent=0 // pred_check
    %p15 = pneg %p14
  $region15: #{_gla_scores.3} parent=0 // pred_check_branch
    %17 = sbr.rel (%p15) target = $region17
  $region16: #{_gla_scores.3} parent=0 // pred_region
    %18 = vst [vmem:[#allocation2] sm:$0xff] 0.0
    %19 = vst [vmem:[#allocation2 + $0x8] sm:$0xff] 0.0
    %20 = vst [vmem:[#allocation2 + $0x10] sm:$0xff] 0.0
    %21 = vst [vmem:[#allocation2 + $0x18] sm:$0xff] 0.0
    %22 = vst [vmem:[#allocation2 + $0x20] sm:$0xff] 0.0
    %23 = vst [vmem:[#allocation2 + $0x28] sm:$0xff] 0.0
    %24 = vst [vmem:[#allocation2 + $0x30] sm:$0xff] 0.0
    %25 = vst [vmem:[#allocation2 + $0x38] sm:$0xff] 0.0
    %26 = vst [vmem:[#allocation2 + $0x40] sm:$0xff] 0.0
    %27 = vst [vmem:[#allocation2 + $0x48] sm:$0xff] 0.0
    %28 = vst [vmem:[#allocation2 + $0x50] sm:$0xff] 0.0
    %29 = vst [vmem:[#allocation2 + $0x58] sm:$0xff] 0.0
    %30 = vst [vmem:[#allocation2 + $0x60] sm:$0xff] 0.0
    %31 = vst [vmem:[#allocation2 + $0x68] sm:$0xff] 0.0
    %32 = vst [vmem:[#allocation2 + $0x70] sm:$0xff] 0.0
    %33 = vst [vmem:[#allocation2 + $0x78] sm:$0xff] 0.0
    %34 = vst [vmem:[#allocation2 + $0x80] sm:$0xff] 0.0
    %35 = vst [vmem:[#allocation2 + $0x88] sm:$0xff] 0.0
    %36 = vst [vmem:[#allocation2 + $0x90] sm:$0xff] 0.0
    %37 = vst [vmem:[#allocation2 + $0x98] sm:$0xff] 0.0
    %38 = vst [vmem:[#allocation2 + $0xa0] sm:$0xff] 0.0
    %39 = vst [vmem:[#allocation2 + $0xa8] sm:$0xff] 0.0
    %40 = vst [vmem:[#allocation2 + $0xb0] sm:$0xff] 0.0
    %41 = vst [vmem:[#allocation2 + $0xb8] sm:$0xff] 0.0
    %42 = vst [vmem:[#allocation2 + $0xc0] sm:$0xff] 0.0
    %43 = vst [vmem:[#allocation2 + $0xc8] sm:$0xff] 0.0
    %44 = vst [vmem:[#allocation2 + $0xd0] sm:$0xff] 0.0
    %45 = vst [vmem:[#allocation2 + $0xd8] sm:$0xff] 0.0
    %46 = vst [vmem:[#allocation2 + $0xe0] sm:$0xff] 0.0
    %47 = vst [vmem:[#allocation2 + $0xe8] sm:$0xff] 0.0
    %48 = vst [vmem:[#allocation2 + $0xf0] sm:$0xff] 0.0
    %49 = vst [vmem:[#allocation2 + $0xf8] sm:$0xff] 0.0
  $region17: #{_gla_scores.3} parent=0 // pred_fallthru
    _
  %v50 = vld [vmem:[%s2] sm:$0xff]
  %v51 = vld [vmem:[%s2 + $0x8] sm:$0xff]
  %v52 = vld [vmem:[%s2 + $0x10] sm:$0xff]
  %v53 = vld [vmem:[%s2 + $0x18] sm:$0xff]
  %v54 = vld [vmem:[%s2 + $0x20] sm:$0xff]
  %v55 = vld [vmem:[%s2 + $0x28] sm:$0xff]
  %v56 = vld [vmem:[%s2 + $0x30] sm:$0xff]
  %v57 = vld [vmem:[%s2 + $0x38] sm:$0xff]
  %v58 = vld [vmem:[%s2 + $0x40] sm:$0xff]
  %v59 = vld [vmem:[%s2 + $0x48] sm:$0xff]
  %v60 = vld [vmem:[%s2 + $0x50] sm:$0xff]
  %v61 = vld [vmem:[%s2 + $0x58] sm:$0xff]
  %v62 = vld [vmem:[%s2 + $0x60] sm:$0xff]
  %v63 = vld [vmem:[%s2 + $0x68] sm:$0xff]
  %v64 = vld [vmem:[%s2 + $0x70] sm:$0xff]
  %v65 = vld [vmem:[%s2 + $0x78] sm:$0xff]
  %v66 = vld [vmem:[%s2 + $0x80] sm:$0xff]
  %v67 = vld [vmem:[%s2 + $0x88] sm:$0xff]
  %v68 = vld [vmem:[%s2 + $0x90] sm:$0xff]
  %v69 = vld [vmem:[%s2 + $0x98] sm:$0xff]
  %v70 = vld [vmem:[%s2 + $0xa0] sm:$0xff]
  %v71 = vld [vmem:[%s2 + $0xa8] sm:$0xff]
  %v72 = vld [vmem:[%s2 + $0xb0] sm:$0xff]
  %v73 = vld [vmem:[%s2 + $0xb8] sm:$0xff]
  %v74 = vld [vmem:[%s2 + $0xc0] sm:$0xff]
  %v75 = vld [vmem:[%s2 + $0xc8] sm:$0xff]
  %v76 = vld [vmem:[%s2 + $0xd0] sm:$0xff]
  %v77 = vld [vmem:[%s2 + $0xd8] sm:$0xff]
  %v78 = vld [vmem:[%s2 + $0xe0] sm:$0xff]
  %v79 = vld [vmem:[%s2 + $0xe8] sm:$0xff]
  %v80 = vld [vmem:[%s2 + $0xf0] sm:$0xff]
  %v81 = vld [vmem:[%s2 + $0xf8] sm:$0xff]
  %v82 = vunpack.c.l.bf16 %v50
  %v83 = vunpack.c.h.bf16 %v50
  %v84 = vunpack.c.l.bf16 %v51
  %v85 = vunpack.c.h.bf16 %v51
  %v86 = vunpack.c.l.bf16 %v52
  %v87 = vunpack.c.h.bf16 %v52
  %v88 = vunpack.c.l.bf16 %v53
  %v89 = vunpack.c.h.bf16 %v53
  %v90 = vunpack.c.l.bf16 %v54
  %v91 = vunpack.c.h.bf16 %v54
  %v92 = vunpack.c.l.bf16 %v55
  %v93 = vunpack.c.h.bf16 %v55
  %v94 = vunpack.c.l.bf16 %v56
  %v95 = vunpack.c.h.bf16 %v56
  %v96 = vunpack.c.l.bf16 %v57
  %v97 = vunpack.c.h.bf16 %v57
  %v98 = vunpack.c.l.bf16 %v58
  %v99 = vunpack.c.h.bf16 %v58
  %v100 = vunpack.c.l.bf16 %v59
  %v101 = vunpack.c.h.bf16 %v59
  %v102 = vunpack.c.l.bf16 %v60
  %v103 = vunpack.c.h.bf16 %v60
  %v104 = vunpack.c.l.bf16 %v61
  %v105 = vunpack.c.h.bf16 %v61
  %v106 = vunpack.c.l.bf16 %v62
  %v107 = vunpack.c.h.bf16 %v62
  %v108 = vunpack.c.l.bf16 %v63
  %v109 = vunpack.c.h.bf16 %v63
  %v110 = vunpack.c.l.bf16 %v64
  %v111 = vunpack.c.h.bf16 %v64
  %v112 = vunpack.c.l.bf16 %v65
  %v113 = vunpack.c.h.bf16 %v65
  %v114 = vunpack.c.l.bf16 %v66
  %v115 = vunpack.c.h.bf16 %v66
  %v116 = vunpack.c.l.bf16 %v67
  %v117 = vunpack.c.h.bf16 %v67
  %v118 = vunpack.c.l.bf16 %v68
  %v119 = vunpack.c.h.bf16 %v68
  %v120 = vunpack.c.l.bf16 %v69
  %v121 = vunpack.c.h.bf16 %v69
  %v122 = vunpack.c.l.bf16 %v70
  %v123 = vunpack.c.h.bf16 %v70
  %v124 = vunpack.c.l.bf16 %v71
  %v125 = vunpack.c.h.bf16 %v71
  %v126 = vunpack.c.l.bf16 %v72
  %v127 = vunpack.c.h.bf16 %v72
  %v128 = vunpack.c.l.bf16 %v73
  %v129 = vunpack.c.h.bf16 %v73
  %v130 = vunpack.c.l.bf16 %v74
  %v131 = vunpack.c.h.bf16 %v74
  %v132 = vunpack.c.l.bf16 %v75
  %v133 = vunpack.c.h.bf16 %v75
  %v134 = vunpack.c.l.bf16 %v76
  %v135 = vunpack.c.h.bf16 %v76
  %v136 = vunpack.c.l.bf16 %v77
  %v137 = vunpack.c.h.bf16 %v77
  %v138 = vunpack.c.l.bf16 %v78
  %v139 = vunpack.c.h.bf16 %v78
  %v140 = vunpack.c.l.bf16 %v79
  %v141 = vunpack.c.h.bf16 %v79
  %v142 = vunpack.c.l.bf16 %v80
  %v143 = vunpack.c.h.bf16 %v80
  %v144 = vunpack.c.l.bf16 %v81
  %v145 = vunpack.c.h.bf16 %v81
  %v146 = vld [vmem:[%s1] sm:$0xff]
  %v147 = vld [vmem:[%s1 + $0x8] sm:$0xff]
  %v148 = vld [vmem:[%s1 + $0x10] sm:$0xff]
  %v149 = vld [vmem:[%s1 + $0x18] sm:$0xff]
  %v150 = vld [vmem:[%s1 + $0x20] sm:$0xff]
  %v151 = vld [vmem:[%s1 + $0x28] sm:$0xff]
  %v152 = vld [vmem:[%s1 + $0x30] sm:$0xff]
  %v153 = vld [vmem:[%s1 + $0x38] sm:$0xff]
  %v154 = vld [vmem:[%s1 + $0x40] sm:$0xff]
  %v155 = vld [vmem:[%s1 + $0x48] sm:$0xff]
  %v156 = vld [vmem:[%s1 + $0x50] sm:$0xff]
  %v157 = vld [vmem:[%s1 + $0x58] sm:$0xff]
  %v158 = vld [vmem:[%s1 + $0x60] sm:$0xff]
  %v159 = vld [vmem:[%s1 + $0x68] sm:$0xff]
  %v160 = vld [vmem:[%s1 + $0x70] sm:$0xff]
  %v161 = vld [vmem:[%s1 + $0x78] sm:$0xff]
  %v162 = vld [vmem:[%s1 + $0x80] sm:$0xff]
  %v163 = vld [vmem:[%s1 + $0x88] sm:$0xff]
  %v164 = vld [vmem:[%s1 + $0x90] sm:$0xff]
  %v165 = vld [vmem:[%s1 + $0x98] sm:$0xff]
  %v166 = vld [vmem:[%s1 + $0xa0] sm:$0xff]
  %v167 = vld [vmem:[%s1 + $0xa8] sm:$0xff]
  %v168 = vld [vmem:[%s1 + $0xb0] sm:$0xff]
  %v169 = vld [vmem:[%s1 + $0xb8] sm:$0xff]
  %v170 = vld [vmem:[%s1 + $0xc0] sm:$0xff]
  %v171 = vld [vmem:[%s1 + $0xc8] sm:$0xff]
  %v172 = vld [vmem:[%s1 + $0xd0] sm:$0xff]
  %v173 = vld [vmem:[%s1 + $0xd8] sm:$0xff]
  %v174 = vld [vmem:[%s1 + $0xe0] sm:$0xff]
  %v175 = vld [vmem:[%s1 + $0xe8] sm:$0xff]
  %v176 = vld [vmem:[%s1 + $0xf0] sm:$0xff]
  %v177 = vld [vmem:[%s1 + $0xf8] sm:$0xff]
  %178 = vmatprep.subr.mxu0 0.0
  %179 = vmatpush1.msra.mxu0 %v146
  %180 = vmatprep.subr.mxu0 0.0
  %181 = vmatpush1.msra.mxu0 %v147
  %182 = vmatprep.subr.mxu0 0.0
  %183 = vmatpush1.msra.mxu0 %v148
  %184 = vmatprep.subr.mxu0 0.0
  %185 = vmatpush1.msra.mxu0 %v149
  %186 = vmatprep.subr.mxu0 0.0
  %187 = vmatpush1.msra.mxu0 %v150
  %188 = vmatprep.subr.mxu0 0.0
  %189 = vmatpush1.msra.mxu0 %v151
  %190 = vmatprep.subr.mxu0 0.0
  %191 = vmatpush1.msra.mxu0 %v152
  %192 = vmatprep.subr.mxu0 0.0
  %193 = vmatpush1.msra.mxu0 %v153
  %194 = vmatprep.subr.mxu0 0.0
  %195 = vmatpush1.msra.mxu0 %v154
  %196 = vmatprep.subr.mxu0 0.0
  %197 = vmatpush1.msra.mxu0 %v155
  %198 = vmatprep.subr.mxu0 0.0
  %199 = vmatpush1.msra.mxu0 %v156
  %200 = vmatprep.subr.mxu0 0.0
  %201 = vmatpush1.msra.mxu0 %v157
  %202 = vmatprep.subr.mxu0 0.0
  %203 = vmatpush1.msra.mxu0 %v158
  %204 = vmatprep.subr.mxu0 0.0
  %205 = vmatpush1.msra.mxu0 %v159
  %206 = vmatprep.subr.mxu0 0.0
  %207 = vmatpush1.msra.mxu0 %v160
  %208 = vmatprep.subr.mxu0 0.0
  %209 = vmatpush1.msra.mxu0 %v161
  %210 = vmatprep.subr.mxu0 0.0
  %211 = vmatpush1.msra.mxu0 %v162
  %212 = vmatprep.subr.mxu0 0.0
  %213 = vmatpush1.msra.mxu0 %v163
  %214 = vmatprep.subr.mxu0 0.0
  %215 = vmatpush1.msra.mxu0 %v164
  %216 = vmatprep.subr.mxu0 0.0
  %217 = vmatpush1.msra.mxu0 %v165
  %218 = vmatprep.subr.mxu0 0.0
  %219 = vmatpush1.msra.mxu0 %v166
  %220 = vmatprep.subr.mxu0 0.0
  %221 = vmatpush1.msra.mxu0 %v167
  %222 = vmatprep.subr.mxu0 0.0
  %223 = vmatpush1.msra.mxu0 %v168
  %224 = vmatprep.subr.mxu0 0.0
  %225 = vmatpush1.msra.mxu0 %v169
  %226 = vmatprep.subr.mxu0 0.0
  %227 = vmatpush1.msra.mxu0 %v170
  %228 = vmatprep.subr.mxu0 0.0
  %229 = vmatpush1.msra.mxu0 %v171
  %230 = vmatprep.subr.mxu0 0.0
  %231 = vmatpush1.msra.mxu0 %v172
  %232 = vmatprep.subr.mxu0 0.0
  %233 = vmatpush1.msra.mxu0 %v173
  %234 = vmatprep.subr.mxu0 0.0
  %235 = vmatpush1.msra.mxu0 %v174
  %236 = vmatprep.subr.mxu0 0.0
  %237 = vmatpush1.msra.mxu0 %v175
  %238 = vmatprep.subr.mxu0 0.0
  %239 = vmatpush1.msra.mxu0 %v176
  %240 = vmatprep.subr.mxu0 0.0
  %241 = vmatpush1.msra.mxu0 %v177
  %242 = vmatprep.mubr.f32.mxu0 %v83
  %243 = vmatmul.mubr.f32.gmra.mrb[0].mxu0 %v82
  %v244 = vpop.f32.mrb[0].mxu0
  %v245 = vadd.f32 0.0, %v244
  %v246 = vpop.f32.mrb[0].mxu0
  %247 = vmatprep.mubr.f32.mxu0 %v85
  %248 = vmatmul.mubr.f32.gmra.mrb[0].mxu0 %v84
  %v249 = vpop.f32.mrb[0].mxu0
  %v250 = vadd.f32 0.0, %v249
  %v251 = vpop.f32.mrb[0].mxu0
  %252 = vmatprep.mubr.f32.mxu0 %v87
  %253 = vmatmul.mubr.f32.gmra.mrb[0].mxu0 %v86
  %v254 = vpop.f32.mrb[0].mxu0
  %v255 = vadd.f32 0.0, %v254
  %v256 = vpop.f32.mrb[0].mxu0
  %257 = vmatprep.mubr.f32.mxu0 %v89
  %258 = vmatmul.mubr.f32.gmra.mrb[0].mxu0 %v88
  %v259 = vpop.f32.mrb[0].mxu0
  %v260 = vadd.f32 0.0, %v259
  %v261 = vpop.f32.mrb[0].mxu0
  %262 = vmatprep.mubr.f32.mxu0 %v91
  %263 = vmatmul.mubr.f32.gmra.mrb[0].mxu0 %v90
  %v264 = vpop.f32.mrb[0].mxu0
  %v265 = vadd.f32 0.0, %v264
  %v266 = vpop.f32.mrb[0].mxu0
  %267 = vmatprep.mubr.f32.mxu0 %v93
  %268 = vmatmul.mubr.f32.gmra.mrb[0].mxu0 %v92
  %v269 = vpop.f32.mrb[0].mxu0
  %v270 = vadd.f32 0.0, %v269
  %v271 = vpop.f32.mrb[0].mxu0
  %272 = vmatprep.mubr.f32.mxu0 %v95
  %273 = vmatmul.mubr.f32.gmra.mrb[0].mxu0 %v94
  %v274 = vpop.f32.mrb[0].mxu0
  %v275 = vadd.f32 0.0, %v274
  %v276 = vpop.f32.mrb[0].mxu0
  %277 = vmatprep.mubr.f32.mxu0 %v97
  %278 = vmatmul.mubr.f32.gmra.mrb[0].mxu0 %v96
  %v279 = vpop.f32.mrb[0].mxu0
  %v280 = vadd.f32 0.0, %v279
  %v281 = vpop.f32.mrb[0].mxu0
  %282 = vmatprep.mubr.f32.mxu0 %v99
  %283 = vmatmul.mubr.f32.gmra.mrb[0].mxu0 %v98
  %v284 = vpop.f32.mrb[0].mxu0
  %v285 = vadd.f32 0.0, %v284
  %v286 = vpop.f32.mrb[0].mxu0
  %287 = vmatprep.mubr.f32.mxu0 %v101
  %288 = vmatmul.mubr.f32.gmra.mrb[0].mxu0 %v100
  %v289 = vpop.f32.mrb[0].mxu0
  %v290 = vadd.f32 0.0, %v289
  %v291 = vpop.f32.mrb[0].mxu0
  %292 = vmatprep.mubr.f32.mxu0 %v103
  %293 = vmatmul.mubr.f32.gmra.mrb[0].mxu0 %v102
  %v294 = vpop.f32.mrb[0].mxu0
  %v295 = vadd.f32 0.0, %v294
  %v296 = vpop.f32.mrb[0].mxu0
  %297 = vmatprep.mubr.f32.mxu0 %v105
  %298 = vmatmul.mubr.f32.gmra.mrb[0].mxu0 %v104
  %v299 = vpop.f32.mrb[0].mxu0
  %v300 = vadd.f32 0.0, %v299
  %v301 = vpop.f32.mrb[0].mxu0
  %302 = vmatprep.mubr.f32.mxu0 %v107
  %303 = vmatmul.mubr.f32.gmra.mrb[0].mxu0 %v106
  %v304 = vpop.f32.mrb[0].mxu0
  %v305 = vadd.f32 0.0, %v304
  %v306 = vpop.f32.mrb[0].mxu0
  %307 = vmatprep.mubr.f32.mxu0 %v109
  %308 = vmatmul.mubr.f32.gmra.mrb[0].mxu0 %v108
  %v309 = vpop.f32.mrb[0].mxu0
  %v310 = vadd.f32 0.0, %v309
  %v311 = vpop.f32.mrb[0].mxu0
  %312 = vmatprep.mubr.f32.mxu0 %v111
  %313 = vmatmul.mubr.f32.gmra.mrb[0].mxu0 %v110
  %v314 = vpop.f32.mrb[0].mxu0
  %v315 = vadd.f32 0.0, %v314
  %v316 = vpop.f32.mrb[0].mxu0
  %317 = vmatprep.mubr.f32.mxu0 %v113
  %318 = vmatmul.mubr.f32.gmra.mrb[0].mxu0 %v112
  %v319 = vpop.f32.mrb[0].mxu0
  %v320 = vadd.f32 0.0, %v319
  %v321 = vpop.f32.mrb[0].mxu0
  %322 = vmatprep.mubr.f32.mxu0 %v115
  %323 = vmatmul.mubr.f32.gmra.mrb[0].mxu0 %v114
  %v324 = vpop.f32.mrb[0].mxu0
  %v325 = vadd.f32 0.0, %v324
  %v326 = vpop.f32.mrb[0].mxu0
  %327 = vmatprep.mubr.f32.mxu0 %v117
  %328 = vmatmul.mubr.f32.gmra.mrb[0].mxu0 %v116
  %v329 = vpop.f32.mrb[0].mxu0
  %v330 = vadd.f32 0.0, %v329
  %v331 = vpop.f32.mrb[0].mxu0
  %332 = vmatprep.mubr.f32.mxu0 %v119
  %333 = vmatmul.mubr.f32.gmra.mrb[0].mxu0 %v118
  %v334 = vpop.f32.mrb[0].mxu0
  %v335 = vadd.f32 0.0, %v334
  %v336 = vpop.f32.mrb[0].mxu0
  %337 = vmatprep.mubr.f32.mxu0 %v121
  %338 = vmatmul.mubr.f32.gmra.mrb[0].mxu0 %v120
  %v339 = vpop.f32.mrb[0].mxu0
  %v340 = vadd.f32 0.0, %v339
  %v341 = vpop.f32.mrb[0].mxu0
  %342 = vmatprep.mubr.f32.mxu0 %v123
  %343 = vmatmul.mubr.f32.gmra.mrb[0].mxu0 %v122
  %v344 = vpop.f32.mrb[0].mxu0
  %v345 = vadd.f32 0.0, %v344
  %v346 = vpop.f32.mrb[0].mxu0
  %347 = vmatprep.mubr.f32.mxu0 %v125
  %348 = vmatmul.mubr.f32.gmra.mrb[0].mxu0 %v124
  %v349 = vpop.f32.mrb[0].mxu0
  %v350 = vadd.f32 0.0, %v349
  %v351 = vpop.f32.mrb[0].mxu0
  %352 = vmatprep.mubr.f32.mxu0 %v127
  %353 = vmatmul.mubr.f32.gmra.mrb[0].mxu0 %v126
  %v354 = vpop.f32.mrb[0].mxu0
  %v355 = vadd.f32 0.0, %v354
  %v356 = vpop.f32.mrb[0].mxu0
  %357 = vmatprep.mubr.f32.mxu0 %v129
  %358 = vmatmul.mubr.f32.gmra.mrb[0].mxu0 %v128
  %v359 = vpop.f32.mrb[0].mxu0
  %v360 = vadd.f32 0.0, %v359
  %v361 = vpop.f32.mrb[0].mxu0
  %362 = vmatprep.mubr.f32.mxu0 %v131
  %363 = vmatmul.mubr.f32.gmra.mrb[0].mxu0 %v130
  %v364 = vpop.f32.mrb[0].mxu0
  %v365 = vadd.f32 0.0, %v364
  %v366 = vpop.f32.mrb[0].mxu0
  %367 = vmatprep.mubr.f32.mxu0 %v133
  %368 = vmatmul.mubr.f32.gmra.mrb[0].mxu0 %v132
  %v369 = vpop.f32.mrb[0].mxu0
  %v370 = vadd.f32 0.0, %v369
  %v371 = vpop.f32.mrb[0].mxu0
  %372 = vmatprep.mubr.f32.mxu0 %v135
  %373 = vmatmul.mubr.f32.gmra.mrb[0].mxu0 %v134
  %v374 = vpop.f32.mrb[0].mxu0
  %v375 = vadd.f32 0.0, %v374
  %v376 = vpop.f32.mrb[0].mxu0
  %377 = vmatprep.mubr.f32.mxu0 %v137
  %378 = vmatmul.mubr.f32.gmra.mrb[0].mxu0 %v136
  %v379 = vpop.f32.mrb[0].mxu0
  %v380 = vadd.f32 0.0, %v379
  %v381 = vpop.f32.mrb[0].mxu0
  %382 = vmatprep.mubr.f32.mxu0 %v139
  %383 = vmatmul.mubr.f32.gmra.mrb[0].mxu0 %v138
  %v384 = vpop.f32.mrb[0].mxu0
  %v385 = vadd.f32 0.0, %v384
  %v386 = vpop.f32.mrb[0].mxu0
  %387 = vmatprep.mubr.f32.mxu0 %v141
  %388 = vmatmul.mubr.f32.gmra.mrb[0].mxu0 %v140
  %v389 = vpop.f32.mrb[0].mxu0
  %v390 = vadd.f32 0.0, %v389
  %v391 = vpop.f32.mrb[0].mxu0
  %392 = vmatprep.mubr.f32.mxu0 %v143
  %393 = vmatmul.mubr.f32.gmra.mrb[0].mxu0 %v142
  %v394 = vpop.f32.mrb[0].mxu0
  %v395 = vadd.f32 0.0, %v394
  %v396 = vpop.f32.mrb[0].mxu0
  %397 = vmatprep.mubr.f32.mxu0 %v145
  %398 = vmatmul.mubr.f32.gmra.mrb[0].mxu0 %v144
  %v399 = vpop.f32.mrb[0].mxu0
  %v400 = vadd.f32 0.0, %v399
  %v401 = vpop.f32.mrb[0].mxu0
  %402 = vdwg.mxu0
  %v403 = vld [vmem:[#allocation2] sm:$0xff]
  %v404 = vld [vmem:[#allocation2 + $0x8] sm:$0xff]
  %v405 = vld [vmem:[#allocation2 + $0x10] sm:$0xff]
  %v406 = vld [vmem:[#allocation2 + $0x18] sm:$0xff]
  %v407 = vld [vmem:[#allocation2 + $0x20] sm:$0xff]
  %v408 = vld [vmem:[#allocation2 + $0x28] sm:$0xff]
  %v409 = vld [vmem:[#allocation2 + $0x30] sm:$0xff]
  %v410 = vld [vmem:[#allocation2 + $0x38] sm:$0xff]
  %v411 = vld [vmem:[#allocation2 + $0x40] sm:$0xff]
  %v412 = vld [vmem:[#allocation2 + $0x48] sm:$0xff]
  %v413 = vld [vmem:[#allocation2 + $0x50] sm:$0xff]
  %v414 = vld [vmem:[#allocation2 + $0x58] sm:$0xff]
  %v415 = vld [vmem:[#allocation2 + $0x60] sm:$0xff]
  %v416 = vld [vmem:[#allocation2 + $0x68] sm:$0xff]
  %v417 = vld [vmem:[#allocation2 + $0x70] sm:$0xff]
  %v418 = vld [vmem:[#allocation2 + $0x78] sm:$0xff]
  %v419 = vld [vmem:[#allocation2 + $0x80] sm:$0xff]
  %v420 = vld [vmem:[#allocation2 + $0x88] sm:$0xff]
  %v421 = vld [vmem:[#allocation2 + $0x90] sm:$0xff]
  %v422 = vld [vmem:[#allocation2 + $0x98] sm:$0xff]
  %v423 = vld [vmem:[#allocation2 + $0xa0] sm:$0xff]
  %v424 = vld [vmem:[#allocation2 + $0xa8] sm:$0xff]
  %v425 = vld [vmem:[#allocation2 + $0xb0] sm:$0xff]
  %v426 = vld [vmem:[#allocation2 + $0xb8] sm:$0xff]
  %v427 = vld [vmem:[#allocation2 + $0xc0] sm:$0xff]
  %v428 = vld [vmem:[#allocation2 + $0xc8] sm:$0xff]
  %v429 = vld [vmem:[#allocation2 + $0xd0] sm:$0xff]
  %v430 = vld [vmem:[#allocation2 + $0xd8] sm:$0xff]
  %v431 = vld [vmem:[#allocation2 + $0xe0] sm:$0xff]
  %v432 = vld [vmem:[#allocation2 + $0xe8] sm:$0xff]
  %v433 = vld [vmem:[#allocation2 + $0xf0] sm:$0xff]
  %v434 = vld [vmem:[#allocation2 + $0xf8] sm:$0xff]
  %436 = vset.pattern.permute.xlu0 0
  %437 = vperm.xlu0 %436, %v245
  %v438 = vpop.permute.xlu0 %437
  %441 = vset.pattern.permute.xlu0 0
  %442 = vperm.xlu0 %441, %v250
  %v443 = vpop.permute.xlu0 %442
  %446 = vset.pattern.permute.xlu0 0
  %447 = vperm.xlu0 %446, %v255
  %v448 = vpop.permute.xlu0 %447
  %451 = vset.pattern.permute.xlu0 0
  %452 = vperm.xlu0 %451, %v260
  %v453 = vpop.permute.xlu0 %452
  %456 = vset.pattern.permute.xlu0 0
  %457 = vperm.xlu0 %456, %v265
  %v458 = vpop.permute.xlu0 %457
  %461 = vset.pattern.permute.xlu0 0
  %462 = vperm.xlu0 %461, %v270
  %v463 = vpop.permute.xlu0 %462
  %466 = vset.pattern.permute.xlu0 0
  %467 = vperm.xlu0 %466, %v275
  %v468 = vpop.permute.xlu0 %467
  %471 = vset.pattern.permute.xlu0 0
  %472 = vperm.xlu0 %471, %v280
  %v473 = vpop.permute.xlu0 %472
  %476 = vset.pattern.permute.xlu0 0
  %477 = vperm.xlu0 %476, %v285
  %v478 = vpop.permute.xlu0 %477
  %481 = vset.pattern.permute.xlu0 0
  %482 = vperm.xlu0 %481, %v290
  %v483 = vpop.permute.xlu0 %482
  %486 = vset.pattern.permute.xlu0 0
  %487 = vperm.xlu0 %486, %v295
  %v488 = vpop.permute.xlu0 %487
  %491 = vset.pattern.permute.xlu0 0
  %492 = vperm.xlu0 %491, %v300
  %v493 = vpop.permute.xlu0 %492
  %496 = vset.pattern.permute.xlu0 0
  %497 = vperm.xlu0 %496, %v305
  %v498 = vpop.permute.xlu0 %497
  %501 = vset.pattern.permute.xlu0 0
  %502 = vperm.xlu0 %501, %v310
  %v503 = vpop.permute.xlu0 %502
  %506 = vset.pattern.permute.xlu0 0
  %507 = vperm.xlu0 %506, %v315
  %v508 = vpop.permute.xlu0 %507
  %511 = vset.pattern.permute.xlu0 0
  %512 = vperm.xlu0 %511, %v320
  %v513 = vpop.permute.xlu0 %512
  %516 = vset.pattern.permute.xlu0 0
  %517 = vperm.xlu0 %516, %v325
  %v518 = vpop.permute.xlu0 %517
  %521 = vset.pattern.permute.xlu0 0
  %522 = vperm.xlu0 %521, %v330
  %v523 = vpop.permute.xlu0 %522
  %526 = vset.pattern.permute.xlu0 0
  %527 = vperm.xlu0 %526, %v335
  %v528 = vpop.permute.xlu0 %527
  %531 = vset.pattern.permute.xlu0 0
  %532 = vperm.xlu0 %531, %v340
  %v533 = vpop.permute.xlu0 %532
  %536 = vset.pattern.permute.xlu0 0
  %537 = vperm.xlu0 %536, %v345
  %v538 = vpop.permute.xlu0 %537
  %541 = vset.pattern.permute.xlu0 0
  %542 = vperm.xlu0 %541, %v350
  %v543 = vpop.permute.xlu0 %542
  %546 = vset.pattern.permute.xlu0 0
  %547 = vperm.xlu0 %546, %v355
  %v548 = vpop.permute.xlu0 %547
  %551 = vset.pattern.permute.xlu0 0
  %552 = vperm.xlu0 %551, %v360
  %v553 = vpop.permute.xlu0 %552
  %556 = vset.pattern.permute.xlu0 0
  %557 = vperm.xlu0 %556, %v365
  %v558 = vpop.permute.xlu0 %557
  %561 = vset.pattern.permute.xlu0 0
  %562 = vperm.xlu0 %561, %v370
  %v563 = vpop.permute.xlu0 %562
  %566 = vset.pattern.permute.xlu0 0
  %567 = vperm.xlu0 %566, %v375
  %v568 = vpop.permute.xlu0 %567
  %571 = vset.pattern.permute.xlu0 0
  %572 = vperm.xlu0 %571, %v380
  %v573 = vpop.permute.xlu0 %572
  %576 = vset.pattern.permute.xlu0 0
  %577 = vperm.xlu0 %576, %v385
  %v578 = vpop.permute.xlu0 %577
  %581 = vset.pattern.permute.xlu0 0
  %582 = vperm.xlu0 %581, %v390
  %v583 = vpop.permute.xlu0 %582
  %586 = vset.pattern.permute.xlu0 0
  %587 = vperm.xlu0 %586, %v395
  %v588 = vpop.permute.xlu0 %587
  %591 = vset.pattern.permute.xlu0 0
  %592 = vperm.xlu0 %591, %v400
  %v593 = vpop.permute.xlu0 %592
  %v595 = vadd.f32 %v403, %v438
  %v596 = vadd.f32 %v404, %v443
  %v597 = vadd.f32 %v405, %v448
  %v598 = vadd.f32 %v406, %v453
  %v599 = vadd.f32 %v407, %v458
  %v600 = vadd.f32 %v408, %v463
  %v601 = vadd.f32 %v409, %v468
  %v602 = vadd.f32 %v410, %v473
  %v603 = vadd.f32 %v411, %v478
  %v604 = vadd.f32 %v412, %v483
  %v605 = vadd.f32 %v413, %v488
  %v606 = vadd.f32 %v414, %v493
  %v607 = vadd.f32 %v415, %v498
  %v608 = vadd.f32 %v416, %v503
  %v609 = vadd.f32 %v417, %v508
  %v610 = vadd.f32 %v418, %v513
  %v611 = vadd.f32 %v419, %v518
  %v612 = vadd.f32 %v420, %v523
  %v613 = vadd.f32 %v421, %v528
  %v614 = vadd.f32 %v422, %v533
  %v615 = vadd.f32 %v423, %v538
  %v616 = vadd.f32 %v424, %v543
  %v617 = vadd.f32 %v425, %v548
  %v618 = vadd.f32 %v426, %v553
  %v619 = vadd.f32 %v427, %v558
  %v620 = vadd.f32 %v428, %v563
  %v621 = vadd.f32 %v429, %v568
  %v622 = vadd.f32 %v430, %v573
  %v623 = vadd.f32 %v431, %v578
  %v624 = vadd.f32 %v432, %v583
  %v625 = vadd.f32 %v433, %v588
  %v626 = vadd.f32 %v434, %v593
  %627 = vst [vmem:[#allocation2] sm:$0xff] %v595
  %628 = vst [vmem:[#allocation2 + $0x8] sm:$0xff] %v596
  %629 = vst [vmem:[#allocation2 + $0x10] sm:$0xff] %v597
  %630 = vst [vmem:[#allocation2 + $0x18] sm:$0xff] %v598
  %631 = vst [vmem:[#allocation2 + $0x20] sm:$0xff] %v599
  %632 = vst [vmem:[#allocation2 + $0x28] sm:$0xff] %v600
  %633 = vst [vmem:[#allocation2 + $0x30] sm:$0xff] %v601
  %634 = vst [vmem:[#allocation2 + $0x38] sm:$0xff] %v602
  %635 = vst [vmem:[#allocation2 + $0x40] sm:$0xff] %v603
  %636 = vst [vmem:[#allocation2 + $0x48] sm:$0xff] %v604
  %637 = vst [vmem:[#allocation2 + $0x50] sm:$0xff] %v605
  %638 = vst [vmem:[#allocation2 + $0x58] sm:$0xff] %v606
  %639 = vst [vmem:[#allocation2 + $0x60] sm:$0xff] %v607
  %640 = vst [vmem:[#allocation2 + $0x68] sm:$0xff] %v608
  %641 = vst [vmem:[#allocation2 + $0x70] sm:$0xff] %v609
  %642 = vst [vmem:[#allocation2 + $0x78] sm:$0xff] %v610
  %643 = vst [vmem:[#allocation2 + $0x80] sm:$0xff] %v611
  %644 = vst [vmem:[#allocation2 + $0x88] sm:$0xff] %v612
  %645 = vst [vmem:[#allocation2 + $0x90] sm:$0xff] %v613
  %646 = vst [vmem:[#allocation2 + $0x98] sm:$0xff] %v614
  %647 = vst [vmem:[#allocation2 + $0xa0] sm:$0xff] %v615
  %648 = vst [vmem:[#allocation2 + $0xa8] sm:$0xff] %v616
  %649 = vst [vmem:[#allocation2 + $0xb0] sm:$0xff] %v617
  %650 = vst [vmem:[#allocation2 + $0xb8] sm:$0xff] %v618
  %651 = vst [vmem:[#allocation2 + $0xc0] sm:$0xff] %v619
  %652 = vst [vmem:[#allocation2 + $0xc8] sm:$0xff] %v620
  %653 = vst [vmem:[#allocation2 + $0xd0] sm:$0xff] %v621
  %654 = vst [vmem:[#allocation2 + $0xd8] sm:$0xff] %v622
  %655 = vst [vmem:[#allocation2 + $0xe0] sm:$0xff] %v623
  %656 = vst [vmem:[#allocation2 + $0xe8] sm:$0xff] %v624
  %657 = vst [vmem:[#allocation2 + $0xf0] sm:$0xff] %v625
  %658 = vst [vmem:[#allocation2 + $0xf8] sm:$0xff] %v626
  // Predicated region
  $region18: #{_gla_scores.3} parent=0 // pred_check
    %p659 = pneg %p14
  $region19: #{_gla_scores.3} parent=0 // pred_check_branch
    %661 = sbr.rel (%p659) target = $region21
  $region20: #{_gla_scores.3} parent=0 // pred_region
    %v662 = vld [vmem:[%s0] sm:$0xff]
    %v663 = vld [vmem:[%s0 + $0x8] sm:$0xff]
    %v664 = vld [vmem:[%s0 + $0x10] sm:$0xff]
    %v665 = vld [vmem:[%s0 + $0x18] sm:$0xff]
    %v666 = vld [vmem:[%s0 + $0x20] sm:$0xff]
    %v667 = vld [vmem:[%s0 + $0x28] sm:$0xff]
    %v668 = vld [vmem:[%s0 + $0x30] sm:$0xff]
    %v669 = vld [vmem:[%s0 + $0x38] sm:$0xff]
    %v670 = vld [vmem:[%s0 + $0x40] sm:$0xff]
    %v671 = vld [vmem:[%s0 + $0x48] sm:$0xff]
    %v672 = vld [vmem:[%s0 + $0x50] sm:$0xff]
    %v673 = vld [vmem:[%s0 + $0x58] sm:$0xff]
    %v674 = vld [vmem:[%s0 + $0x60] sm:$0xff]
    %v675 = vld [vmem:[%s0 + $0x68] sm:$0xff]
    %v676 = vld [vmem:[%s0 + $0x70] sm:$0xff]
    %v677 = vld [vmem:[%s0 + $0x78] sm:$0xff]
    %v678 = vld [vmem:[%s0 + $0x80] sm:$0xff]
    %v679 = vld [vmem:[%s0 + $0x88] sm:$0xff]
    %v680 = vld [vmem:[%s0 + $0x90] sm:$0xff]
    %v681 = vld [vmem:[%s0 + $0x98] sm:$0xff]
    %v682 = vld [vmem:[%s0 + $0xa0] sm:$0xff]
    %v683 = vld [vmem:[%s0 + $0xa8] sm:$0xff]
    %v684 = vld [vmem:[%s0 + $0xb0] sm:$0xff]
    %v685 = vld [vmem:[%s0 + $0xb8] sm:$0xff]
    %v686 = vld [vmem:[%s0 + $0xc0] sm:$0xff]
    %v687 = vld [vmem:[%s0 + $0xc8] sm:$0xff]
    %v688 = vld [vmem:[%s0 + $0xd0] sm:$0xff]
    %v689 = vld [vmem:[%s0 + $0xd8] sm:$0xff]
    %v690 = vld [vmem:[%s0 + $0xe0] sm:$0xff]
    %v691 = vld [vmem:[%s0 + $0xe8] sm:$0xff]
    %v692 = vld [vmem:[%s0 + $0xf0] sm:$0xff]
    %v693 = vld [vmem:[%s0 + $0xf8] sm:$0xff]
    %v694 = vld [vmem:[#allocation2] sm:$0xff]
    %v695 = vld [vmem:[#allocation2 + $0x8] sm:$0xff]
    %v696 = vld [vmem:[#allocation2 + $0x10] sm:$0xff]
    %v697 = vld [vmem:[#allocation2 + $0x18] sm:$0xff]
    %v698 = vld [vmem:[#allocation2 + $0x20] sm:$0xff]
    %v699 = vld [vmem:[#allocation2 + $0x28] sm:$0xff]
    %v700 = vld [vmem:[#allocation2 + $0x30] sm:$0xff]
    %v701 = vld [vmem:[#allocation2 + $0x38] sm:$0xff]
    %v702 = vld [vmem:[#allocation2 + $0x40] sm:$0xff]
    %v703 = vld [vmem:[#allocation2 + $0x48] sm:$0xff]
    %v704 = vld [vmem:[#allocation2 + $0x50] sm:$0xff]
    %v705 = vld [vmem:[#allocation2 + $0x58] sm:$0xff]
    %v706 = vld [vmem:[#allocation2 + $0x60] sm:$0xff]
    %v707 = vld [vmem:[#allocation2 + $0x68] sm:$0xff]
    %v708 = vld [vmem:[#allocation2 + $0x70] sm:$0xff]
    %v709 = vld [vmem:[#allocation2 + $0x78] sm:$0xff]
    %v710 = vld [vmem:[#allocation2 + $0x80] sm:$0xff]
    %v711 = vld [vmem:[#allocation2 + $0x88] sm:$0xff]
    %v712 = vld [vmem:[#allocation2 + $0x90] sm:$0xff]
    %v713 = vld [vmem:[#allocation2 + $0x98] sm:$0xff]
    %v714 = vld [vmem:[#allocation2 + $0xa0] sm:$0xff]
    %v715 = vld [vmem:[#allocation2 + $0xa8] sm:$0xff]
    %v716 = vld [vmem:[#allocation2 + $0xb0] sm:$0xff]
    %v717 = vld [vmem:[#allocation2 + $0xb8] sm:$0xff]
    %v718 = vld [vmem:[#allocation2 + $0xc0] sm:$0xff]
    %v719 = vld [vmem:[#allocation2 + $0xc8] sm:$0xff]
    %v720 = vld [vmem:[#allocation2 + $0xd0] sm:$0xff]
    %v721 = vld [vmem:[#allocation2 + $0xd8] sm:$0xff]
    %v722 = vld [vmem:[#allocation2 + $0xe0] sm:$0xff]
    %v723 = vld [vmem:[#allocation2 + $0xe8] sm:$0xff]
    %v724 = vld [vmem:[#allocation2 + $0xf0] sm:$0xff]
    %v725 = vld [vmem:[#allocation2 + $0xf8] sm:$0xff]
    %v726 = vmul.f32 %v694, 0.4
    %v727 = vmul.f32 %v695, 0.4
    %v728 = vmul.f32 %v696, 0.4
    %v729 = vmul.f32 %v697, 0.4
    %v730 = vmul.f32 %v698, 0.4
    %v731 = vmul.f32 %v699, 0.4
    %v732 = vmul.f32 %v700, 0.4
    %v733 = vmul.f32 %v701, 0.4
    %v734 = vmul.f32 %v702, 0.4
    %v735 = vmul.f32 %v703, 0.4
    %v736 = vmul.f32 %v704, 0.4
    %v737 = vmul.f32 %v705, 0.4
    %v738 = vmul.f32 %v706, 0.4
    %v739 = vmul.f32 %v707, 0.4
    %v740 = vmul.f32 %v708, 0.4
    %v741 = vmul.f32 %v709, 0.4
    %v742 = vmul.f32 %v710, 0.4
    %v743 = vmul.f32 %v711, 0.4
    %v744 = vmul.f32 %v712, 0.4
    %v745 = vmul.f32 %v713, 0.4
    %v746 = vmul.f32 %v714, 0.4
    %v747 = vmul.f32 %v715, 0.4
    %v748 = vmul.f32 %v716, 0.4
    %v749 = vmul.f32 %v717, 0.4
    %v750 = vmul.f32 %v718, 0.4
    %v751 = vmul.f32 %v719, 0.4
    %v752 = vmul.f32 %v720, 0.4
    %v753 = vmul.f32 %v721, 0.4
    %v754 = vmul.f32 %v722, 0.4
    %v755 = vmul.f32 %v723, 0.4
    %v756 = vmul.f32 %v724, 0.4
    %v757 = vmul.f32 %v725, 0.4
    %759 = vset.pattern.permute.xlu0 0
    %760 = vperm.xlu0 %759, %v662
    %v761 = vpop.permute.xlu0 %760
    %764 = vset.pattern.permute.xlu0 0
    %765 = vperm.xlu0 %764, %v663
    %v766 = vpop.permute.xlu0 %765
    %769 = vset.pattern.permute.xlu0 0
    %770 = vperm.xlu0 %769, %v664
    %v771 = vpop.permute.xlu0 %770
    %774 = vset.pattern.permute.xlu0 0
    %775 = vperm.xlu0 %774, %v665
    %v776 = vpop.permute.xlu0 %775
    %779 = vset.pattern.permute.xlu0 0
    %780 = vperm.xlu0 %779, %v666
    %v781 = vpop.permute.xlu0 %780
    %784 = vset.pattern.permute.xlu0 0
    %785 = vperm.xlu0 %784, %v667
    %v786 = vpop.permute.xlu0 %785
    %789 = vset.pattern.permute.xlu0 0
    %790 = vperm.xlu0 %789, %v668
    %v791 = vpop.permute.xlu0 %790
    %794 = vset.pattern.permute.xlu0 0
    %795 = vperm.xlu0 %794, %v669
    %v796 = vpop.permute.xlu0 %795
    %799 = vset.pattern.permute.xlu0 0
    %800 = vperm.xlu0 %799, %v670
    %v801 = vpop.permute.xlu0 %800
    %804 = vset.pattern.permute.xlu0 0
    %805 = vperm.xlu0 %804, %v671
    %v806 = vpop.permute.xlu0 %805
    %809 = vset.pattern.permute.xlu0 0
    %810 = vperm.xlu0 %809, %v672
    %v811 = vpop.permute.xlu0 %810
    %814 = vset.pattern.permute.xlu0 0
    %815 = vperm.xlu0 %814, %v673
    %v816 = vpop.permute.xlu0 %815
    %819 = vset.pattern.permute.xlu0 0
    %820 = vperm.xlu0 %819, %v674
    %v821 = vpop.permute.xlu0 %820
    %824 = vset.pattern.permute.xlu0 0
    %825 = vperm.xlu0 %824, %v675
    %v826 = vpop.permute.xlu0 %825
    %829 = vset.pattern.permute.xlu0 0
    %830 = vperm.xlu0 %829, %v676
    %v831 = vpop.permute.xlu0 %830
    %834 = vset.pattern.permute.xlu0 0
    %835 = vperm.xlu0 %834, %v677
    %v836 = vpop.permute.xlu0 %835
    %839 = vset.pattern.permute.xlu0 0
    %840 = vperm.xlu0 %839, %v678
    %v841 = vpop.permute.xlu0 %840
    %844 = vset.pattern.permute.xlu0 0
    %845 = vperm.xlu0 %844, %v679
    %v846 = vpop.permute.xlu0 %845
    %849 = vset.pattern.permute.xlu0 0
    %850 = vperm.xlu0 %849, %v680
    %v851 = vpop.permute.xlu0 %850
    %854 = vset.pattern.permute.xlu0 0
    %855 = vperm.xlu0 %854, %v681
    %v856 = vpop.permute.xlu0 %855
    %859 = vset.pattern.permute.xlu0 0
    %860 = vperm.xlu0 %859, %v682
    %v861 = vpop.permute.xlu0 %860
    %864 = vset.pattern.permute.xlu0 0
    %865 = vperm.xlu0 %864, %v683
    %v866 = vpop.permute.xlu0 %865
    %869 = vset.pattern.permute.xlu0 0
    %870 = vperm.xlu0 %869, %v684
    %v871 = vpop.permute.xlu0 %870
    %874 = vset.pattern.permute.xlu0 0
    %875 = vperm.xlu0 %874, %v685
    %v876 = vpop.permute.xlu0 %875
    %879 = vset.pattern.permute.xlu0 0
    %880 = vperm.xlu0 %879, %v686
    %v881 = vpop.permute.xlu0 %880
    %884 = vset.pattern.permute.xlu0 0
    %885 = vperm.xlu0 %884, %v687
    %v886 = vpop.permute.xlu0 %885
    %889 = vset.pattern.permute.xlu0 0
    %890 = vperm.xlu0 %889, %v688
    %v891 = vpop.permute.xlu0 %890
    %894 = vset.pattern.permute.xlu0 0
    %895 = vperm.xlu0 %894, %v689
    %v896 = vpop.permute.xlu0 %895
    %899 = vset.pattern.permute.xlu0 0
    %900 = vperm.xlu0 %899, %v690
    %v901 = vpop.permute.xlu0 %900
    %904 = vset.pattern.permute.xlu0 0
    %905 = vperm.xlu0 %904, %v691
    %v906 = vpop.permute.xlu0 %905
    %909 = vset.pattern.permute.xlu0 0
    %910 = vperm.xlu0 %909, %v692
    %v911 = vpop.permute.xlu0 %910
    %914 = vset.pattern.permute.xlu0 0
    %915 = vperm.xlu0 %914, %v693
    %v916 = vpop.permute.xlu0 %915
    %v918 = vadd.f32 %v761, %v726
    %v919 = vadd.f32 %v766, %v727
    %v920 = vadd.f32 %v771, %v728
    %v921 = vadd.f32 %v776, %v729
    %v922 = vadd.f32 %v781, %v730
    %v923 = vadd.f32 %v786, %v731
    %v924 = vadd.f32 %v791, %v732
    %v925 = vadd.f32 %v796, %v733
    %v926 = vadd.f32 %v801, %v734
    %v927 = vadd.f32 %v806, %v735
    %v928 = vadd.f32 %v811, %v736
    %v929 = vadd.f32 %v816, %v737
    %v930 = vadd.f32 %v821, %v738
    %v931 = vadd.f32 %v826, %v739
    %v932 = vadd.f32 %v831, %v740
    %v933 = vadd.f32 %v836, %v741
    %v934 = vadd.f32 %v841, %v742
    %v935 = vadd.f32 %v846, %v743
    %v936 = vadd.f32 %v851, %v744
    %v937 = vadd.f32 %v856, %v745
    %v938 = vadd.f32 %v861, %v746
    %v939 = vadd.f32 %v866, %v747
    %v940 = vadd.f32 %v871, %v748
    %v941 = vadd.f32 %v876, %v749
    %v942 = vadd.f32 %v881, %v750
    %v943 = vadd.f32 %v886, %v751
    %v944 = vadd.f32 %v891, %v752
    %v945 = vadd.f32 %v896, %v753
    %v946 = vadd.f32 %v901, %v754
    %v947 = vadd.f32 %v906, %v755
    %v948 = vadd.f32 %v911, %v756
    %v949 = vadd.f32 %v916, %v757
    %950 = vst [vmem:[%s3] sm:$0xff] %v918
    %951 = vst [vmem:[%s3 + $0x8] sm:$0xff] %v919
    %952 = vst [vmem:[%s3 + $0x10] sm:$0xff] %v920
    %953 = vst [vmem:[%s3 + $0x18] sm:$0xff] %v921
    %954 = vst [vmem:[%s3 + $0x20] sm:$0xff] %v922
    %955 = vst [vmem:[%s3 + $0x28] sm:$0xff] %v923
    %956 = vst [vmem:[%s3 + $0x30] sm:$0xff] %v924
    %957 = vst [vmem:[%s3 + $0x38] sm:$0xff] %v925
    %958 = vst [vmem:[%s3 + $0x40] sm:$0xff] %v926
    %959 = vst [vmem:[%s3 + $0x48] sm:$0xff] %v927
    %960 = vst [vmem:[%s3 + $0x50] sm:$0xff] %v928
    %961 = vst [vmem:[%s3 + $0x58] sm:$0xff] %v929
    %962 = vst [vmem:[%s3 + $0x60] sm:$0xff] %v930
    %963 = vst [vmem:[%s3 + $0x68] sm:$0xff] %v931
    %964 = vst [vmem:[%s3 + $0x70] sm:$0xff] %v932
    %965 = vst [vmem:[%s3 + $0x78] sm:$0xff] %v933
    %966 = vst [vmem:[%s3 + $0x80] sm:$0xff] %v934
    %967 = vst [vmem:[%s3 + $0x88] sm:$0xff] %v935
    %968 = vst [vmem:[%s3 + $0x90] sm:$0xff] %v936
    %969 = vst [vmem:[%s3 + $0x98] sm:$0xff] %v937
    %970 = vst [vmem:[%s3 + $0xa0] sm:$0xff] %v938
    %971 = vst [vmem:[%s3 + $0xa8] sm:$0xff] %v939
    %972 = vst [vmem:[%s3 + $0xb0] sm:$0xff] %v940
    %973 = vst [vmem:[%s3 + $0xb8] sm:$0xff] %v941
    %974 = vst [vmem:[%s3 + $0xc0] sm:$0xff] %v942
    %975 = vst [vmem:[%s3 + $0xc8] sm:$0xff] %v943
    %976 = vst [vmem:[%s3 + $0xd0] sm:$0xff] %v944
    %977 = vst [vmem:[%s3 + $0xd8] sm:$0xff] %v945
    %978 = vst [vmem:[%s3 + $0xe0] sm:$0xff] %v946
    %979 = vst [vmem:[%s3 + $0xe8] sm:$0xff] %v947
    %980 = vst [vmem:[%s3 + $0xf0] sm:$0xff] %v948
    %981 = vst [vmem:[%s3 + $0xf8] sm:$0xff] %v949
  $region21: #{_gla_scores.3} parent=0 // pred_fallthru
    _
  // Predicated region
  $region22: #{_gla_scores.3} parent=0 // pred_check
    _
  $region23: #{_gla_scores.3} parent=0 // pred_check_branch
    %983 = sbr.rel (0) target = $region25
  $region24: #{_gla_scores.3} parent=0 // pred_region
    _
  $region25: #{_gla_scores.3} parent=0 // pred_fallthru
    _
  // Predicated region
  $region26: #{_gla_scores.3} parent=0 // pred_check
    _
  $region27: #{_gla_scores.3} parent=0 // pred_check_branch
    %985 = sbr.rel (0) target = $region29
  $region28: #{_gla_scores.3} parent=0 // pred_region
    _
  $region29: #{_gla_scores.3} parent=0 // pred_fallthru
    _

</llo_original>
